<compile_context>
chip_gen: v7x
topology: tpu7x:2x2x1
jax: 0.10.0
libtpu: 0.0.40
codegen_flags: <defaults>
</compile_context>

<pallas_src>
import functools

import jax
import jax.numpy as jnp
from jax.experimental import pallas as pl
from jax.experimental.pallas import tpu as pltpu


def _factor_encoder_kernel(feats_ref, returns_ref, eps_ref, pf_ref, head_ref,
                           out_ref, *, n_stocks, n_feats, n_pfs, n_factors, tile_b):
    N, H, M, K = n_stocks, n_feats, n_pfs, n_factors

    # ---- shared parameters (bias packed in the last row of each buffer) ----
    pf = pf_ref[...]                              # (H+1, M)
    w_pf, b_pf = pf[:H, :], pf[H:H + 1, :]
    hp = head_ref[...]                            # (M+1, 2K)
    w_head, b_head = hp[:M, :], hp[M:M + 1, :]

    # ---- pf_layer Linear for the whole batch tile in ONE MXU matmul ----
    feats = feats_ref[...]                        # (tile_b * N, H)
    logits = jnp.dot(feats, w_pf,
                     preferred_element_type=jnp.float32) + b_pf   # (tile_b*N, M)

    returns = returns_ref[...]                    # (tile_b, N)

    # ---- per-sample softmax over stocks (dim=0), fused with the returns contraction ----
    num_rows, den_rows = [], []
    for b in range(tile_b):                       # unrolled; samples are independent
        seg = logits[b * N:(b + 1) * N, :]        # (N, M), sublane-aligned static slice
        m = jnp.max(seg, axis=0, keepdims=True)   # (1, M)
        e = jnp.exp(seg - m)                      # (N, M)
        den_rows.append(jnp.sum(e, axis=0, keepdims=True))                   # (1, M)
        r = returns[b:b + 1, :]                   # (1, N)
        num_rows.append(jnp.dot(r, e, preferred_element_type=jnp.float32))   # (1, M)

    num = jnp.concatenate(num_rows, axis=0)       # (tile_b, M) == returns @ exp(...)
    den = jnp.concatenate(den_rows, axis=0)       # (tile_b, M) == softmax denominator
    # returns @ softmax(logits, axis=0) == (returns @ e) / sum(e); reciprocal -> EUP slot
    pf_ret = num * pl.reciprocal(den, approx=True)                           # (tile_b, M)

    # ---- fused mean/std heads: ONE matmul gives [mean | std_pre] ----
    head = jnp.dot(pf_ret, w_head,
                   preferred_element_type=jnp.float32) + b_head              # (tile_b, 2K)
    mean = head[:, :K]
    std = jax.nn.softplus(head[:, K:])

    # torch.normal(mean, std) -> reparameterized mean + std * eps, eps ~ N(0, 1)
    out_ref[...] = mean + std * eps_ref[...]


def factor_encoder_batched(returns, feats, params, eps, *, tile_b=8):
    """returns: (B, N), feats: (B, N, H), eps: (B, K) std-normal noise -> (B, K)."""
    B, N, H = feats.shape
    M = params["b_pf"].shape[0]
    K = params["b_mean"].shape[0]

    def f32(x):
        return x if x.dtype == jnp.float32 else x.astype(jnp.float32)

    feats, returns, eps = f32(feats), f32(returns), f32(eps)

    # Pad batch to a multiple of tile_b (sublane-dense (tile_b, K) output blocks).
    b_pad = -(-B // tile_b) * tile_b
    if b_pad != B:
        pad = b_pad - B
        feats = jnp.pad(feats, ((0, pad), (0, 0), (0, 0)))
        returns = jnp.pad(returns, ((0, pad), (0, 0)))
        eps = jnp.pad(eps, ((0, pad), (0, 0)))

    feats2d = feats.reshape(b_pad * N, H)         # one clean 2-D matmul operand per tile

    # Pack params host-side: 2 small shared buffers instead of 6 tiny DMAs.
    pf_params = jnp.concatenate(
        [f32(params["w_pf"]), f32(params["b_pf"])[None, :]], axis=0)          # (H+1, M)
    w_head = jnp.concatenate([f32(params["w_mean"]), f32(params["w_std"])], axis=1)  # (M, 2K)
    b_head = jnp.concatenate([f32(params["b_mean"]), f32(params["b_std"])], axis=0)  # (2K,)
    head_params = jnp.concatenate([w_head, b_head[None, :]], axis=0)          # (M+1, 2K)

    kernel = functools.partial(
        _factor_encoder_kernel,
        n_stocks=N, n_feats=H, n_pfs=M, n_factors=K, tile_b=tile_b)

    out = pl.pallas_call(
        kernel,
        out_shape=jax.ShapeDtypeStruct((b_pad, K), jnp.float32),
        grid=(b_pad // tile_b,),
        in_specs=[
            pl.BlockSpec((tile_b * N, H), lambda i: (i, 0)),   # feats rows for this tile
            pl.BlockSpec((tile_b, N), lambda i: (i, 0)),       # returns
            pl.BlockSpec((tile_b, K), lambda i: (i, 0)),       # eps
            pl.BlockSpec((H + 1, M), lambda i: (0, 0)),        # packed pf weight+bias (shared)
            pl.BlockSpec((M + 1, 2 * K), lambda i: (0, 0)),    # packed head weight+bias (shared)
        ],
        out_specs=pl.BlockSpec((tile_b, K), lambda i: (i, 0)),
        compiler_params=pltpu.CompilerParams(
            dimension_semantics=("parallel",)),                # batch axis -> megacore on v7x
    )(feats2d, returns, eps, pf_params, head_params)

    return out[:B]


def factor_encoder(returns, feats, params, eps):
    """Single-sample path matching the PyTorch module: returns (N,), feats (N,H) -> (K,)."""
    z = factor_encoder_batched(returns[None, :], feats[None, :, :], params, eps[None, :])
    return z[0]


def factor_encoder_reference(returns, feats, params, eps):
    """Pure-JAX reference of the batched forward pass."""
    logits = jnp.einsum("bnh,hm->bnm", feats, params["w_pf"]) + params["b_pf"]
    pf_w = jax.nn.softmax(logits, axis=1)                      # softmax over stocks (dim=0)
    pf_ret = jnp.einsum("bn,bnm->bm", returns, pf_w)
    mean = pf_ret @ params["w_mean"] + params["b_mean"]
    std = jax.nn.softplus(pf_ret @ params["w_std"] + params["b_std"])
    return mean + std * eps


def init_params(key, num_pfs, num_factors, num_feats):
    """nn.Linear-style init (uniform +/-1/sqrt(fan_in)); weights stored (in, out)."""
    ks = jax.random.split(key, 6)

    def lin(kw, kb, fan_in, fan_out):
        bound = 1.0 / jnp.sqrt(fan_in)
        w = jax.random.uniform(kw, (fan_in, fan_out), jnp.float32, -bound, bound)
        b = jax.random.uniform(kb, (fan_out,), jnp.float32, -bound, bound)
        return w, b

    w_pf, b_pf = lin(ks[0], ks[1], num_feats, num_pfs)          # Linear(H, M)
    w_mean, b_mean = lin(ks[2], ks[3], num_pfs, num_factors)    # Linear(M, K)
    w_std, b_std = lin(ks[4], ks[5], num_pfs, num_factors)      # Linear(M, K)
    return {
        "w_pf": w_pf, "b_pf": b_pf,
        "w_mean": w_mean, "b_mean": b_mean,
        "w_std": w_std, "b_std": b_std,
    }


if __name__ == "__main__":
    # Small shapes consistent with the module:
    #   B (batch of encoder calls) = 16, N (stocks) = 16, H (num_feats) = 32,
    #   M (num_pfs) = 8, K (num_factors) = 4
    B, N, H, M, K = 16, 16, 32, 8, 4

    key = jax.random.PRNGKey(0)
    k_ret, k_feat, k_param, k_eps = jax.random.split(key, 4)

    returns = jax.random.normal(k_ret, (B, N), jnp.float32)
    feats = jax.random.normal(k_feat, (B, N, H), jnp.float32)
    params = init_params(k_param, num_pfs=M, num_factors=K, num_feats=H)
    eps = jax.random.normal(k_eps, (B, K), jnp.float32)  # replaces torch.normal's internal RNG

    z = jax.jit(factor_encoder_batched)(returns, feats, params, eps)
    jax.block_until_ready(z)
    assert z.shape == (B, K) and z.dtype == jnp.float32

    z_ref = factor_encoder_reference(returns, feats, params, eps)
    # Loose tolerance only because of the approx (EUP) reciprocal in the softmax denominator.
    assert jnp.allclose(z, z_ref, atol=2e-2, rtol=2e-2), "kernel deviates from reference"

    # Single-sample path matching the original module's (K,) output.
    z0 = factor_encoder(returns[0], feats[0], params, eps[0])
    jax.block_until_ready(z0)
    assert z0.shape == (K,) and z0.dtype == jnp.float32

    print("KERNEL_OK")
</pallas_src>

<mosaic_0001>
module attributes {stable_mosaic.version = 11 : i64} {
  func.func @_factor_encoder_kernel(%arg0: i32, %arg1: memref<128x32xf32, #tpu.memory_space<vmem>>, %arg2: memref<8x16xf32, #tpu.memory_space<vmem>>, %arg3: memref<8x4xf32, #tpu.memory_space<vmem>>, %arg4: memref<33x8xf32, #tpu.memory_space<vmem>>, %arg5: memref<9x8xf32, #tpu.memory_space<vmem>>, %arg6: memref<8x4xf32, #tpu.memory_space<vmem>>) attributes {dimension_semantics = [#tpu.dimension_semantics<parallel>], iteration_bounds = array<i64: 2>, scalar_prefetch = 0 : i64, scratch_operands = 0 : i64, tpu.core_type = #tpu.core_type<tc>, window_params = [{transform_indices = @transform_0, window_bounds = array<i64: 128, 32>}, {transform_indices = @transform_1, window_bounds = array<i64: 8, 16>}, {transform_indices = @transform_2, window_bounds = array<i64: 8, 4>}, {pipeline_mode = #tpu.pipeline_mode<synchronous>, transform_indices = @transform_3, window_bounds = array<i64: 33, 8>}, {pipeline_mode = #tpu.pipeline_mode<synchronous>, transform_indices = @transform_4, window_bounds = array<i64: 9, 8>}, {transform_indices = @transform_5, window_bounds = array<i64: 8, 4>}]} {
    %c0 = arith.constant 0 : index
    %c0_0 = arith.constant 0 : index
    %0 = vector.load %arg4[%c0, %c0_0] : memref<33x8xf32, #tpu.memory_space<vmem>>, vector<33x8xf32>
    %1 = vector.extract_strided_slice %0 {offsets = [0, 0], sizes = [32, 8], strides = [1, 1]} : vector<33x8xf32> to vector<32x8xf32>
    %2 = vector.extract_strided_slice %0 {offsets = [32, 0], sizes = [1, 8], strides = [1, 1]} : vector<33x8xf32> to vector<1x8xf32>
    %c0_1 = arith.constant 0 : index
    %c0_2 = arith.constant 0 : index
    %3 = vector.load %arg5[%c0_1, %c0_2] : memref<9x8xf32, #tpu.memory_space<vmem>>, vector<9x8xf32>
    %4 = vector.extract_strided_slice %3 {offsets = [0, 0], sizes = [8, 8], strides = [1, 1]} : vector<9x8xf32> to vector<8x8xf32>
    %5 = vector.extract_strided_slice %3 {offsets = [8, 0], sizes = [1, 8], strides = [1, 1]} : vector<9x8xf32> to vector<1x8xf32>
    %c0_3 = arith.constant 0 : index
    %c0_4 = arith.constant 0 : index
    %6 = vector.load %arg1[%c0_3, %c0_4] : memref<128x32xf32, #tpu.memory_space<vmem>>, vector<128x32xf32>
    %cst = arith.constant dense<0.000000e+00> : vector<128x8xf32>
    %7 = tpu.matmul %6, %1, %cst {dimension_numbers = #tpu.dot_dimension_numbers<[1], [0], [0], [1], [0, 0, 1, 1], [], []>} : vector<128x32xf32>, vector<32x8xf32>, vector<128x8xf32> -> vector<128x8xf32>
    %8 = vector.broadcast %2 : vector<1x8xf32> to vector<128x8xf32>
    %9 = arith.addf %7, %8 : vector<128x8xf32>
    %c0_5 = arith.constant 0 : index
    %c0_6 = arith.constant 0 : index
    %10 = vector.load %arg2[%c0_5, %c0_6] : memref<8x16xf32, #tpu.memory_space<vmem>>, vector<8x16xf32>
    %11 = vector.extract_strided_slice %9 {offsets = [0, 0], sizes = [16, 8], strides = [1, 1]} : vector<128x8xf32> to vector<16x8xf32>
    %cst_7 = arith.constant dense<0xFF800000> : vector<8xf32>
    %12 = vector.multi_reduction <maximumf>, %11, %cst_7 [0] : vector<16x8xf32> to vector<8xf32>
    %13 = vector.shape_cast %12 : vector<8xf32> to vector<1x8xf32>
    %14 = vector.broadcast %13 : vector<1x8xf32> to vector<16x8xf32>
    %15 = arith.subf %11, %14 : vector<16x8xf32>
    %16 = math.exp %15 : vector<16x8xf32>
    %cst_8 = arith.constant dense<0.000000e+00> : vector<8xf32>
    %17 = vector.multi_reduction <add>, %16, %cst_8 [0] : vector<16x8xf32> to vector<8xf32>
    %18 = vector.shape_cast %17 : vector<8xf32> to vector<1x8xf32>
    %19 = vector.extract_strided_slice %10 {offsets = [0, 0], sizes = [1, 16], strides = [1, 1]} : vector<8x16xf32> to vector<1x16xf32>
    %cst_9 = arith.constant dense<0.000000e+00> : vector<1x8xf32>
    %20 = tpu.matmul %19, %16, %cst_9 {dimension_numbers = #tpu.dot_dimension_numbers<[1], [0], [0], [1], [0, 0, 1, 1], [], []>} : vector<1x16xf32>, vector<16x8xf32>, vector<1x8xf32> -> vector<1x8xf32>
    %21 = vector.extract_strided_slice %9 {offsets = [16, 0], sizes = [16, 8], strides = [1, 1]} : vector<128x8xf32> to vector<16x8xf32>
    %cst_10 = arith.constant dense<0xFF800000> : vector<8xf32>
    %22 = vector.multi_reduction <maximumf>, %21, %cst_10 [0] : vector<16x8xf32> to vector<8xf32>
    %23 = vector.shape_cast %22 : vector<8xf32> to vector<1x8xf32>
    %24 = vector.broadcast %23 : vector<1x8xf32> to vector<16x8xf32>
    %25 = arith.subf %21, %24 : vector<16x8xf32>
    %26 = math.exp %25 : vector<16x8xf32>
    %cst_11 = arith.constant dense<0.000000e+00> : vector<8xf32>
    %27 = vector.multi_reduction <add>, %26, %cst_11 [0] : vector<16x8xf32> to vector<8xf32>
    %28 = vector.shape_cast %27 : vector<8xf32> to vector<1x8xf32>
    %29 = vector.extract_strided_slice %10 {offsets = [1, 0], sizes = [1, 16], strides = [1, 1]} : vector<8x16xf32> to vector<1x16xf32>
    %cst_12 = arith.constant dense<0.000000e+00> : vector<1x8xf32>
    %30 = tpu.matmul %29, %26, %cst_12 {dimension_numbers = #tpu.dot_dimension_numbers<[1], [0], [0], [1], [0, 0, 1, 1], [], []>} : vector<1x16xf32>, vector<16x8xf32>, vector<1x8xf32> -> vector<1x8xf32>
    %31 = vector.extract_strided_slice %9 {offsets = [32, 0], sizes = [16, 8], strides = [1, 1]} : vector<128x8xf32> to vector<16x8xf32>
    %cst_13 = arith.constant dense<0xFF800000> : vector<8xf32>
    %32 = vector.multi_reduction <maximumf>, %31, %cst_13 [0] : vector<16x8xf32> to vector<8xf32>
    %33 = vector.shape_cast %32 : vector<8xf32> to vector<1x8xf32>
    %34 = vector.broadcast %33 : vector<1x8xf32> to vector<16x8xf32>
    %35 = arith.subf %31, %34 : vector<16x8xf32>
    %36 = math.exp %35 : vector<16x8xf32>
    %cst_14 = arith.constant dense<0.000000e+00> : vector<8xf32>
    %37 = vector.multi_reduction <add>, %36, %cst_14 [0] : vector<16x8xf32> to vector<8xf32>
    %38 = vector.shape_cast %37 : vector<8xf32> to vector<1x8xf32>
    %39 = vector.extract_strided_slice %10 {offsets = [2, 0], sizes = [1, 16], strides = [1, 1]} : vector<8x16xf32> to vector<1x16xf32>
    %cst_15 = arith.constant dense<0.000000e+00> : vector<1x8xf32>
    %40 = tpu.matmul %39, %36, %cst_15 {dimension_numbers = #tpu.dot_dimension_numbers<[1], [0], [0], [1], [0, 0, 1, 1], [], []>} : vector<1x16xf32>, vector<16x8xf32>, vector<1x8xf32> -> vector<1x8xf32>
    %41 = vector.extract_strided_slice %9 {offsets = [48, 0], sizes = [16, 8], strides = [1, 1]} : vector<128x8xf32> to vector<16x8xf32>
    %cst_16 = arith.constant dense<0xFF800000> : vector<8xf32>
    %42 = vector.multi_reduction <maximumf>, %41, %cst_16 [0] : vector<16x8xf32> to vector<8xf32>
    %43 = vector.shape_cast %42 : vector<8xf32> to vector<1x8xf32>
    %44 = vector.broadcast %43 : vector<1x8xf32> to vector<16x8xf32>
    %45 = arith.subf %41, %44 : vector<16x8xf32>
    %46 = math.exp %45 : vector<16x8xf32>
    %cst_17 = arith.constant dense<0.000000e+00> : vector<8xf32>
    %47 = vector.multi_reduction <add>, %46, %cst_17 [0] : vector<16x8xf32> to vector<8xf32>
    %48 = vector.shape_cast %47 : vector<8xf32> to vector<1x8xf32>
    %49 = vector.extract_strided_slice %10 {offsets = [3, 0], sizes = [1, 16], strides = [1, 1]} : vector<8x16xf32> to vector<1x16xf32>
    %cst_18 = arith.constant dense<0.000000e+00> : vector<1x8xf32>
    %50 = tpu.matmul %49, %46, %cst_18 {dimension_numbers = #tpu.dot_dimension_numbers<[1], [0], [0], [1], [0, 0, 1, 1], [], []>} : vector<1x16xf32>, vector<16x8xf32>, vector<1x8xf32> -> vector<1x8xf32>
    %51 = vector.extract_strided_slice %9 {offsets = [64, 0], sizes = [16, 8], strides = [1, 1]} : vector<128x8xf32> to vector<16x8xf32>
    %cst_19 = arith.constant dense<0xFF800000> : vector<8xf32>
    %52 = vector.multi_reduction <maximumf>, %51, %cst_19 [0] : vector<16x8xf32> to vector<8xf32>
    %53 = vector.shape_cast %52 : vector<8xf32> to vector<1x8xf32>
    %54 = vector.broadcast %53 : vector<1x8xf32> to vector<16x8xf32>
    %55 = arith.subf %51, %54 : vector<16x8xf32>
    %56 = math.exp %55 : vector<16x8xf32>
    %cst_20 = arith.constant dense<0.000000e+00> : vector<8xf32>
    %57 = vector.multi_reduction <add>, %56, %cst_20 [0] : vector<16x8xf32> to vector<8xf32>
    %58 = vector.shape_cast %57 : vector<8xf32> to vector<1x8xf32>
    %59 = vector.extract_strided_slice %10 {offsets = [4, 0], sizes = [1, 16], strides = [1, 1]} : vector<8x16xf32> to vector<1x16xf32>
    %cst_21 = arith.constant dense<0.000000e+00> : vector<1x8xf32>
    %60 = tpu.matmul %59, %56, %cst_21 {dimension_numbers = #tpu.dot_dimension_numbers<[1], [0], [0], [1], [0, 0, 1, 1], [], []>} : vector<1x16xf32>, vector<16x8xf32>, vector<1x8xf32> -> vector<1x8xf32>
    %61 = vector.extract_strided_slice %9 {offsets = [80, 0], sizes = [16, 8], strides = [1, 1]} : vector<128x8xf32> to vector<16x8xf32>
    %cst_22 = arith.constant dense<0xFF800000> : vector<8xf32>
    %62 = vector.multi_reduction <maximumf>, %61, %cst_22 [0] : vector<16x8xf32> to vector<8xf32>
    %63 = vector.shape_cast %62 : vector<8xf32> to vector<1x8xf32>
    %64 = vector.broadcast %63 : vector<1x8xf32> to vector<16x8xf32>
    %65 = arith.subf %61, %64 : vector<16x8xf32>
    %66 = math.exp %65 : vector<16x8xf32>
    %cst_23 = arith.constant dense<0.000000e+00> : vector<8xf32>
    %67 = vector.multi_reduction <add>, %66, %cst_23 [0] : vector<16x8xf32> to vector<8xf32>
    %68 = vector.shape_cast %67 : vector<8xf32> to vector<1x8xf32>
    %69 = vector.extract_strided_slice %10 {offsets = [5, 0], sizes = [1, 16], strides = [1, 1]} : vector<8x16xf32> to vector<1x16xf32>
    %cst_24 = arith.constant dense<0.000000e+00> : vector<1x8xf32>
    %70 = tpu.matmul %69, %66, %cst_24 {dimension_numbers = #tpu.dot_dimension_numbers<[1], [0], [0], [1], [0, 0, 1, 1], [], []>} : vector<1x16xf32>, vector<16x8xf32>, vector<1x8xf32> -> vector<1x8xf32>
    %71 = vector.extract_strided_slice %9 {offsets = [96, 0], sizes = [16, 8], strides = [1, 1]} : vector<128x8xf32> to vector<16x8xf32>
    %cst_25 = arith.constant dense<0xFF800000> : vector<8xf32>
    %72 = vector.multi_reduction <maximumf>, %71, %cst_25 [0] : vector<16x8xf32> to vector<8xf32>
    %73 = vector.shape_cast %72 : vector<8xf32> to vector<1x8xf32>
    %74 = vector.broadcast %73 : vector<1x8xf32> to vector<16x8xf32>
    %75 = arith.subf %71, %74 : vector<16x8xf32>
    %76 = math.exp %75 : vector<16x8xf32>
    %cst_26 = arith.constant dense<0.000000e+00> : vector<8xf32>
    %77 = vector.multi_reduction <add>, %76, %cst_26 [0] : vector<16x8xf32> to vector<8xf32>
    %78 = vector.shape_cast %77 : vector<8xf32> to vector<1x8xf32>
    %79 = vector.extract_strided_slice %10 {offsets = [6, 0], sizes = [1, 16], strides = [1, 1]} : vector<8x16xf32> to vector<1x16xf32>
    %cst_27 = arith.constant dense<0.000000e+00> : vector<1x8xf32>
    %80 = tpu.matmul %79, %76, %cst_27 {dimension_numbers = #tpu.dot_dimension_numbers<[1], [0], [0], [1], [0, 0, 1, 1], [], []>} : vector<1x16xf32>, vector<16x8xf32>, vector<1x8xf32> -> vector<1x8xf32>
    %81 = vector.extract_strided_slice %9 {offsets = [112, 0], sizes = [16, 8], strides = [1, 1]} : vector<128x8xf32> to vector<16x8xf32>
    %cst_28 = arith.constant dense<0xFF800000> : vector<8xf32>
    %82 = vector.multi_reduction <maximumf>, %81, %cst_28 [0] : vector<16x8xf32> to vector<8xf32>
    %83 = vector.shape_cast %82 : vector<8xf32> to vector<1x8xf32>
    %84 = vector.broadcast %83 : vector<1x8xf32> to vector<16x8xf32>
    %85 = arith.subf %81, %84 : vector<16x8xf32>
    %86 = math.exp %85 : vector<16x8xf32>
    %cst_29 = arith.constant dense<0.000000e+00> : vector<8xf32>
    %87 = vector.multi_reduction <add>, %86, %cst_29 [0] : vector<16x8xf32> to vector<8xf32>
    %88 = vector.shape_cast %87 : vector<8xf32> to vector<1x8xf32>
    %89 = vector.extract_strided_slice %10 {offsets = [7, 0], sizes = [1, 16], strides = [1, 1]} : vector<8x16xf32> to vector<1x16xf32>
    %cst_30 = arith.constant dense<0.000000e+00> : vector<1x8xf32>
    %90 = tpu.matmul %89, %86, %cst_30 {dimension_numbers = #tpu.dot_dimension_numbers<[1], [0], [0], [1], [0, 0, 1, 1], [], []>} : vector<1x16xf32>, vector<16x8xf32>, vector<1x8xf32> -> vector<1x8xf32>
    %91 = tpu.concatenate %20, %30, %40, %50, %60, %70, %80, %90 in 0 : vector<1x8xf32>, vector<1x8xf32>, vector<1x8xf32>, vector<1x8xf32>, vector<1x8xf32>, vector<1x8xf32>, vector<1x8xf32>, vector<1x8xf32> -> vector<8x8xf32>
    %92 = tpu.concatenate %18, %28, %38, %48, %58, %68, %78, %88 in 0 : vector<1x8xf32>, vector<1x8xf32>, vector<1x8xf32>, vector<1x8xf32>, vector<1x8xf32>, vector<1x8xf32>, vector<1x8xf32>, vector<1x8xf32> -> vector<8x8xf32>
    %93 = tpu.reciprocal %92 {approx = true} : vector<8x8xf32> -> vector<8x8xf32>
    %94 = arith.mulf %91, %93 : vector<8x8xf32>
    %cst_31 = arith.constant dense<0.000000e+00> : vector<8x8xf32>
    %95 = tpu.matmul %94, %4, %cst_31 {dimension_numbers = #tpu.dot_dimension_numbers<[1], [0], [0], [1], [0, 0, 1, 1], [], []>} : vector<8x8xf32>, vector<8x8xf32>, vector<8x8xf32> -> vector<8x8xf32>
    %96 = vector.broadcast %5 : vector<1x8xf32> to vector<8x8xf32>
    %97 = arith.addf %95, %96 : vector<8x8xf32>
    %98 = vector.extract_strided_slice %97 {offsets = [0, 0], sizes = [8, 4], strides = [1, 1]} : vector<8x8xf32> to vector<8x4xf32>
    %99 = vector.extract_strided_slice %97 {offsets = [0, 4], sizes = [8, 4], strides = [1, 1]} : vector<8x8xf32> to vector<8x4xf32>
    %cst_32 = arith.constant 0.000000e+00 : f32
    %100 = vector.broadcast %cst_32 : f32 to vector<8x4xf32>
    %101 = arith.maximumf %99, %100 : vector<8x4xf32>
    %102 = vector.broadcast %cst_32 : f32 to vector<8x4xf32>
    %103 = arith.subf %99, %102 : vector<8x4xf32>
    %104 = arith.cmpf one, %103, %103 : vector<8x4xf32>
    %105 = vector.broadcast %cst_32 : f32 to vector<8x4xf32>
    %106 = arith.addf %99, %105 : vector<8x4xf32>
    %107 = math.absf %103 : vector<8x4xf32>
    %cst_33 = arith.constant 0.000000e+00 : f32
    %108 = vector.broadcast %cst_33 : f32 to vector<8x4xf32>
    %109 = arith.subf %108, %107 : vector<8x4xf32>
    %110 = math.exp %109 : vector<8x4xf32>
    %111 = math.log1p %110 : vector<8x4xf32>
    %112 = arith.addf %101, %111 : vector<8x4xf32>
    %113 = arith.select %104, %106, %112 : vector<8x4xi1>, vector<8x4xf32>
    %c0_34 = arith.constant 0 : index
    %c0_35 = arith.constant 0 : index
    %114 = vector.load %arg3[%c0_34, %c0_35] : memref<8x4xf32, #tpu.memory_space<vmem>>, vector<8x4xf32>
    %115 = arith.mulf %113, %114 : vector<8x4xf32>
    %116 = arith.addf %98, %115 : vector<8x4xf32>
    %c0_36 = arith.constant 0 : index
    %c0_37 = arith.constant 0 : index
    %117 = vector.load %arg6[%c0_36, %c0_37] : memref<8x4xf32, #tpu.memory_space<vmem>>, vector<8x4xf32>
    tpu.vector_store %arg6[%c0_36, %c0_37], %116 {strides = array<i32>} : memref<8x4xf32, #tpu.memory_space<vmem>>, vector<8x4xf32>,
    return
  }
  func.func @transform_0(%arg0: i32) -> (i32, i32) {
    %c0_i32 = arith.constant 0 : i32
    %c0_i32_0 = arith.constant 0 : i32
    return %arg0, %c0_i32 : i32, i32
  }
  func.func @transform_1(%arg0: i32) -> (i32, i32) {
    %c0_i32 = arith.constant 0 : i32
    %c0_i32_0 = arith.constant 0 : i32
    return %arg0, %c0_i32 : i32, i32
  }
  func.func @transform_2(%arg0: i32) -> (i32, i32) {
    %c0_i32 = arith.constant 0 : i32
    %c0_i32_0 = arith.constant 0 : i32
    return %arg0, %c0_i32 : i32, i32
  }
  func.func @transform_3(%arg0: i32) -> (i32, i32) {
    %c0_i32 = arith.constant 0 : i32
    %c0_i32_0 = arith.constant 0 : i32
    %c0_i32_1 = arith.constant 0 : i32
    return %c0_i32, %c0_i32_0 : i32, i32
  }
  func.func @transform_4(%arg0: i32) -> (i32, i32) {
    %c0_i32 = arith.constant 0 : i32
    %c0_i32_0 = arith.constant 0 : i32
    %c0_i32_1 = arith.constant 0 : i32
    return %c0_i32, %c0_i32_0 : i32, i32
  }
  func.func @transform_5(%arg0: i32) -> (i32, i32) {
    %c0_i32 = arith.constant 0 : i32
    %c0_i32_0 = arith.constant 0 : i32
    return %arg0, %c0_i32 : i32, i32
  }
}

</mosaic_0001>

<llo_original>
// kernel: factor_encoder_batched.1
$region0: #{factor_encoder_batched.1}
  #allocation0 [shape = 'u32[]', space=smem, size = 0x4, offset = 0x4, fixed_abs, tag = 'smem constant byte address 0x4 - core index']
  #allocation1 [shape = 'u32[144,128]{1,0:T(1,128)}', space=vmem, size = 0x12000, scoped, tag = 'internal scratch']
  %s0 = inlined_call_operand.hbm [shape: f32[256,32], index: 0, kind: input, shape index: {}]
  %s1 = inlined_call_operand.vmem [shape: f32[16,16], index: 1, kind: input, shape index: {}]
  %s2 = inlined_call_operand.vmem [shape: f32[16,4], index: 2, kind: input, shape index: {}]
  %s3 = inlined_call_operand.vmem [shape: f32[33,8], index: 3, kind: input, shape index: {}]
  %s4 = inlined_call_operand.vmem [shape: f32[9,8], index: 4, kind: input, shape index: {}]
  %s5 = inlined_call_operand.vmem [shape: f32[16,4], index: 5, kind: output, shape index: {}]
  %s6 = sld [smem:[#allocation0]]
  $region57: #{factor_encoder_batched.1} parent=0
    _
  %s8 = ssub.s32 1, %s6
  %s9 = scalar_select 0, %s8, %s6
  $region1: #{factor_encoder_batched.1} parent=0
    #allocation2 [shape = 'u8[131072]{0}', space=vmem, size = 0x20000, scoped, tag = 'input window, operand 0']
    #allocation3 [shape = 's32[2]{0}', space=sflag, size = 0x8, scoped, tag = 'scoped memory for factor_encoder_batched.1']
    %10 = vsyncpa [#allocation3], 0
    %s11 = scalar_lea.sflag [#allocation3], 1
    %12 = vsyncpa %s11, 0
    loop: start=0, step=1, limit=4
    $region2: #{factor_encoder_batched.1} parent=1 // loop_pre_header
      _
    $region3: #{factor_encoder_batched.1} parent=1 // loop_header
      %s14 = sphi 0, %s18
      %p15 = scmp.ge.s32.totalorder %s14, 4
      %s24 = sphi 0, %s26
      %s27 = sphi 0, %s24
      %s28 = sphi 0, %s27
      %s44 = sphi 0, %s28
      %s50 = sphi 0, %s52
      %s53 = sphi 0, %s50
      %s54 = sphi 0, %s53
      %s70 = sphi 0, %s54
      %s76 = sphi 0, %s78
      %s79 = sphi 0, %s76
      %s80 = sphi 0, %s79
      %s96 = sphi 0, %s80
      %s100 = sphi 0, %s100
      %s102 = sphi 0, %s100
      %s103 = sphi 0, %s102
      %s117 = sphi 0, %s103
      %s121 = sphi 0, %s121
      %s123 = sphi 0, %s121
      %s124 = sphi 0, %s123
      %s138 = sphi 0, %s124
      %s144 = sphi 0, %s146
      %s147 = sphi 0, %s144
      %s148 = sphi 0, %s147
      %s164 = sphi 0, %s148
    $region4: #{factor_encoder_batched.1} parent=1 // loop_header_branch
      %17 = sbr.rel (%p15) target = $region8
    $region5: #{factor_encoder_batched.1} parent=1 // loop_body
      %s19 = ssub.s32 %s14, 1
      %s20 = ssub.s32 %s14, 2
      %s21 = sadd.s32 %s14, 1
      %s22 = ssub.s32 %s14, %s21
      %p23 = scmp.eq.s32.totalorder %s22, 0
      %s25 = sadd.s32 %s24, 1
      %s26 = scalar_select %p23, %s24, %s25
      %p29 = pneg %p23
      %p30 = scmp.eq.s32.totalorder %s14, 1
      %p31 = por %p29, %p30
      %p32 = scmp.ne.s32.totalorder %s24, %s27
      %p33 = scmp.eq.s32.totalorder %s14, 0
      %p34 = por %p32, %p33
      %p35 = scmp.ne.s32.totalorder %s24, %s27
      %p36 = scmp.eq.s32.totalorder %s19, 1
      %p37 = por %p35, %p36
      %p38 = scmp.ne.s32.totalorder %s27, %s28
      %p39 = scmp.eq.s32.totalorder %s19, 0
      %p40 = por %p38, %p39
      %p41 = scmp.ne.s32.totalorder %s27, %s28
      %p42 = scmp.eq.s32.totalorder %s20, 1
      %p43 = por %p41, %p42
      %p45 = scmp.ne.s32.totalorder %s28, %s44
      %p46 = scmp.eq.s32.totalorder %s20, 0
      %p47 = por %p45, %p46
      %s48 = ssub.s32 %s14, %s21
      %p49 = scmp.eq.s32.totalorder %s48, 0
      %s51 = sadd.s32 %s50, 1
      %s52 = scalar_select %p49, %s50, %s51
      %p55 = pneg %p49
      %p56 = scmp.eq.s32.totalorder %s14, 1
      %p57 = por %p55, %p56
      %p58 = scmp.ne.s32.totalorder %s50, %s53
      %p59 = scmp.eq.s32.totalorder %s14, 0
      %p60 = por %p58, %p59
      %p61 = scmp.ne.s32.totalorder %s50, %s53
      %p62 = scmp.eq.s32.totalorder %s19, 1
      %p63 = por %p61, %p62
      %p64 = scmp.ne.s32.totalorder %s53, %s54
      %p65 = scmp.eq.s32.totalorder %s19, 0
      %p66 = por %p64, %p65
      %p67 = scmp.ne.s32.totalorder %s53, %s54
      %p68 = scmp.eq.s32.totalorder %s20, 1
      %p69 = por %p67, %p68
      %p71 = scmp.ne.s32.totalorder %s54, %s70
      %p72 = scmp.eq.s32.totalorder %s20, 0
      %p73 = por %p71, %p72
      %s74 = ssub.s32 %s14, %s21
      %p75 = scmp.eq.s32.totalorder %s74, 0
      %s77 = sadd.s32 %s76, 1
      %s78 = scalar_select %p75, %s76, %s77
      %p81 = pneg %p75
      %p82 = scmp.eq.s32.totalorder %s14, 1
      %p83 = por %p81, %p82
      %p84 = scmp.ne.s32.totalorder %s76, %s79
      %p85 = scmp.eq.s32.totalorder %s14, 0
      %p86 = por %p84, %p85
      %p87 = scmp.ne.s32.totalorder %s76, %s79
      %p88 = scmp.eq.s32.totalorder %s19, 1
      %p89 = por %p87, %p88
      %p90 = scmp.ne.s32.totalorder %s79, %s80
      %p91 = scmp.eq.s32.totalorder %s19, 0
      %p92 = por %p90, %p91
      %p93 = scmp.ne.s32.totalorder %s79, %s80
      %p94 = scmp.eq.s32.totalorder %s20, 1
      %p95 = por %p93, %p94
      %p97 = scmp.ne.s32.totalorder %s80, %s96
      %p98 = scmp.eq.s32.totalorder %s20, 0
      %p99 = por %p97, %p98
      %s101 = sadd.s32 %s100, 1
      %p104 = scmp.eq.s32.totalorder %s14, 1
      %p105 = scmp.ne.s32.totalorder %s100, %s102
      %p106 = scmp.eq.s32.totalorder %s14, 0
      %p107 = por %p105, %p106
      %p108 = scmp.ne.s32.totalorder %s100, %s102
      %p109 = scmp.eq.s32.totalorder %s19, 1
      %p110 = por %p108, %p109
      %p111 = scmp.ne.s32.totalorder %s102, %s103
      %p112 = scmp.eq.s32.totalorder %s19, 0
      %p113 = por %p111, %p112
      %p114 = scmp.ne.s32.totalorder %s102, %s103
      %p115 = scmp.eq.s32.totalorder %s20, 1
      %p116 = por %p114, %p115
      %p118 = scmp.ne.s32.totalorder %s103, %s117
      %p119 = scmp.eq.s32.totalorder %s20, 0
      %p120 = por %p118, %p119
      %s122 = sadd.s32 %s121, 1
      %p125 = scmp.eq.s32.totalorder %s14, 1
      %p126 = scmp.ne.s32.totalorder %s121, %s123
      %p127 = scmp.eq.s32.totalorder %s14, 0
      %p128 = por %p126, %p127
      %p129 = scmp.ne.s32.totalorder %s121, %s123
      %p130 = scmp.eq.s32.totalorder %s19, 1
      %p131 = por %p129, %p130
      %p132 = scmp.ne.s32.totalorder %s123, %s124
      %p133 = scmp.eq.s32.totalorder %s19, 0
      %p134 = por %p132, %p133
      %p135 = scmp.ne.s32.totalorder %s123, %s124
      %p136 = scmp.eq.s32.totalorder %s20, 1
      %p137 = por %p135, %p136
      %p139 = scmp.ne.s32.totalorder %s124, %s138
      %p140 = scmp.eq.s32.totalorder %s20, 0
      %p141 = por %p139, %p140
      %s142 = ssub.s32 %s14, %s21
      %p143 = scmp.eq.s32.totalorder %s142, 0
      %s145 = sadd.s32 %s144, 1
      %s146 = scalar_select %p143, %s144, %s145
      %p149 = pneg %p143
      %p150 = scmp.eq.s32.totalorder %s14, 1
      %p151 = por %p149, %p150
      %p152 = scmp.ne.s32.totalorder %s144, %s147
      %p153 = scmp.eq.s32.totalorder %s14, 0
      %p154 = por %p152, %p153
      %p155 = scmp.ne.s32.totalorder %s144, %s147
      %p156 = scmp.eq.s32.totalorder %s19, 1
      %p157 = por %p155, %p156
      %p158 = scmp.ne.s32.totalorder %s147, %s148
      %p159 = scmp.eq.s32.totalorder %s19, 0
      %p160 = por %p158, %p159
      %p161 = scmp.ne.s32.totalorder %s147, %s148
      %p162 = scmp.eq.s32.totalorder %s20, 1
      %p163 = por %p161, %p162
      %p165 = scmp.ne.s32.totalorder %s148, %s164
      %p166 = scmp.eq.s32.totalorder %s20, 0
      %p167 = por %p165, %p166
      %p168 = scmp.le.s32.totalorder 1, %s14
      %p169 = scmp.lt.s32.totalorder %s14, 3
      %p170 = pnand %p168, %p169
      %p171 = pneg %p170
      // Predicated region
      $region9: #{factor_encoder_batched.1} parent=5 // pred_check
        _
      $region10: #{factor_encoder_batched.1} parent=5 // pred_check_branch
        %173 = sbr.rel (%p170) target = $region12
      $region11: #{factor_encoder_batched.1} parent=5 // pred_region
        %s174 = ssub.s32 %s14, 1
        // Predicated region
        $region13: #{factor_encoder_batched.1} parent=11 // pred_check
          %p175 = pneg %p113
        $region14: #{factor_encoder_batched.1} parent=11 // pred_check_branch
          %177 = sbr.rel (%p175) target = $region16
        $region15: #{factor_encoder_batched.1} parent=11 // pred_region
          _
        $region16: #{factor_encoder_batched.1} parent=11 // pred_fallthru
          _
        // Predicated region
        $region17: #{factor_encoder_batched.1} parent=11 // pred_check
          %p178 = pneg %p134
        $region18: #{factor_encoder_batched.1} parent=11 // pred_check_branch
          %180 = sbr.rel (%p178) target = $region20
        $region19: #{factor_encoder_batched.1} parent=11 // pred_region
          _
        $region20: #{factor_encoder_batched.1} parent=11 // pred_fallthru
          _
      $region12: #{factor_encoder_batched.1} parent=5 // pred_fallthru
        _
      %p181 = scmp.lt.s32.totalorder %s14, 2
      // Predicated region
      $region21: #{factor_encoder_batched.1} parent=5 // pred_check
        %p182 = pneg %p181
      $region22: #{factor_encoder_batched.1} parent=5 // pred_check_branch
        %184 = sbr.rel (%p182) target = $region24
      $region23: #{factor_encoder_batched.1} parent=5 // pred_region
        // Predicated region
        $region25: #{factor_encoder_batched.1} parent=23 // pred_check
          %p185 = pneg %p34
        $region26: #{factor_encoder_batched.1} parent=23 // pred_check_branch
          %187 = sbr.rel (%p185) target = $region28
        $region27: #{factor_encoder_batched.1} parent=23 // pred_region
          %s188 = sand.u32 %s24, 1
          %s189 = scalar_lea.sflag [#allocation3], %s188
          %s190 = sand.u32 %s24, 1
          %s191 = smul.addr %s190, 128
          %s192 = scalar_lea.vmem [#allocation2], %s191
          %s193 = smul.u32 16, %s14
          %s195 = ssub.s32 2048, 2048
          %196 = vsyncadd %s189, %s195
          %s197 = smul.addr %s193, 128
          %s198 = scalar_lea.hbm %s0, %s197
          %s199 = sshll.u32 %s192, 4
          %s200 = int_to_ptr.vmem [resolvable:$true] %s199
          %205 = dma.hbm_to_vmem [thread:$0]  %s198, 2048, %s200, %s189, 128, 128, 8
        $region28: #{factor_encoder_batched.1} parent=23 // pred_fallthru
          _
        // Predicated region
        $region29: #{factor_encoder_batched.1} parent=23 // pred_check
          %p206 = pneg %p60
        $region30: #{factor_encoder_batched.1} parent=23 // pred_check_branch
          %208 = sbr.rel (%p206) target = $region32
        $region31: #{factor_encoder_batched.1} parent=23 // pred_region
          %p209 = scmp.lt.s32.totalorder %s14, 1
          %s210 = scalar_select %p209, %s14, 1
          %s211 = smul.addr %s210, 8
          %s212 = scalar_lea.vmem %s1, %s211
        $region32: #{factor_encoder_batched.1} parent=23 // pred_fallthru
          _
        // Predicated region
        $region33: #{factor_encoder_batched.1} parent=23 // pred_check
          %p213 = pneg %p86
        $region34: #{factor_encoder_batched.1} parent=23 // pred_check_branch
          %215 = sbr.rel (%p213) target = $region36
        $region35: #{factor_encoder_batched.1} parent=23 // pred_region
          %p216 = scmp.lt.s32.totalorder %s14, 1
          %s217 = scalar_select %p216, %s14, 1
          %s218 = smul.addr %s217, 8
          %s219 = scalar_lea.vmem %s2, %s218
        $region36: #{factor_encoder_batched.1} parent=23 // pred_fallthru
          _
      $region24: #{factor_encoder_batched.1} parent=5 // pred_fallthru
        _
      %p220 = scmp.le.s32.totalorder 1, %s14
      %p221 = scmp.lt.s32.totalorder %s14, 3
      %p222 = pnand %p220, %p221
      %p223 = pneg %p222
      // Predicated region
      $region37: #{factor_encoder_batched.1} parent=5 // pred_check
        _
      $region38: #{factor_encoder_batched.1} parent=5 // pred_check_branch
        %225 = sbr.rel (%p222) target = $region40
      $region39: #{factor_encoder_batched.1} parent=5 // pred_region
        %s226 = ssub.s32 %s14, 1
        %s227 = sand.u32 %s27, 1
        %s228 = scalar_lea.sflag [#allocation3], %s227
        %s229 = sand.u32 %s27, 1
        %s230 = smul.addr %s229, 128
        %s231 = scalar_lea.vmem [#allocation2], %s230
        // Predicated region
        $region41: #{factor_encoder_batched.1} parent=39 // pred_check
          %p232 = pneg %p40
        $region42: #{factor_encoder_batched.1} parent=39 // pred_check_branch
          %234 = sbr.rel (%p232) target = $region44
        $region43: #{factor_encoder_batched.1} parent=39 // pred_region
          %235 = dma.done %s228, 2048
        $region44: #{factor_encoder_batched.1} parent=39 // pred_fallthru
          _
        %s236 = sand.u32 %s27, 1
        %s237 = scalar_lea.sflag [#allocation3], %s236
        %s238 = sand.u32 %s27, 1
        %s239 = smul.addr %s238, 128
        %s240 = scalar_lea.vmem [#allocation2], %s239
        %p241 = pneg %p40
        %p242 = pneg %p37
        %p243 = scmp.lt.s32.totalorder %s19, 1
        %s244 = scalar_select %p243, %s19, 1
        %s245 = smul.addr %s244, 8
        %s246 = scalar_lea.vmem %s1, %s245
        %p247 = pneg %p66
        %p248 = pneg %p63
        %p249 = scmp.lt.s32.totalorder %s19, 1
        %s250 = scalar_select %p249, %s19, 1
        %s251 = smul.addr %s250, 8
        %s252 = scalar_lea.vmem %s2, %s251
        %p253 = pneg %p92
        %p254 = pneg %p89
        %p255 = pneg %p113
        %p256 = pneg %p110
        %p257 = pneg %p134
        %p258 = pneg %p131
        %p259 = pneg %p160
        %p260 = pneg %p157
        %p261 = scmp.lt.s32.totalorder %s19, 1
        %s262 = scalar_select %p261, %s19, 1
        %s263 = smul.addr %s262, 8
        %s264 = scalar_lea.vmem %s5, %s263
        %s265 = smul.u32 16, %s19
        %p266 = scmp.lt.s32.totalorder %s19, 1
        %s267 = scalar_select %p266, %s19, 1
        %s268 = smul.addr %s267, 8
        %s269 = scalar_lea.vmem %s1, %s268
        %p270 = scmp.lt.s32.totalorder %s19, 1
        %s271 = scalar_select %p270, %s19, 1
        %s272 = smul.addr %s271, 8
        %s273 = scalar_lea.vmem %s2, %s272
        %p274 = scmp.lt.s32.totalorder %s19, 1
        %s275 = scalar_select %p274, %s19, 1
        %s276 = smul.addr %s275, 8
        %s277 = scalar_lea.vmem %s5, %s276
        %v278 = vld [vmem:[%s3] sm:$0xff]
        %v279 = vld [vmem:[%s3 + $0x8] sm:$0xff]
        %v280 = vld [vmem:[%s3 + $0x10] sm:$0xff]
        %v281 = vld [vmem:[%s3 + $0x18] sm:$0xff]
        %v282 = vld [vmem:[%s3 + $0x20] sm:$0x1]
        %v283 = vld [vmem:[%s4] sm:$0xff]
        %v284 = vld [vmem:[%s4 + $0x8] sm:$0x1]
        %v285 = vld [vmem:[%s231] sm:$0xff]
        %v286 = vld [vmem:[%s231 + $0x8] sm:$0xff]
        %v287 = vld [vmem:[%s231 + $0x10] sm:$0xff]
        %v288 = vld [vmem:[%s231 + $0x18] sm:$0xff]
        %v289 = vld [vmem:[%s231 + $0x20] sm:$0xff]
        %v290 = vld [vmem:[%s231 + $0x28] sm:$0xff]
        %v291 = vld [vmem:[%s231 + $0x30] sm:$0xff]
        %v292 = vld [vmem:[%s231 + $0x38] sm:$0xff]
        %v293 = vld [vmem:[%s231 + $0x40] sm:$0xff]
        %v294 = vld [vmem:[%s231 + $0x48] sm:$0xff]
        %v295 = vld [vmem:[%s231 + $0x50] sm:$0xff]
        %v296 = vld [vmem:[%s231 + $0x58] sm:$0xff]
        %v297 = vld [vmem:[%s231 + $0x60] sm:$0xff]
        %v298 = vld [vmem:[%s231 + $0x68] sm:$0xff]
        %v299 = vld [vmem:[%s231 + $0x70] sm:$0xff]
        %v300 = vld [vmem:[%s231 + $0x78] sm:$0xff]
        %v301 = vlaneseq
        %v302 = vshrl.u32 %v301, 7
        %v303 = vsub.s32 0, %v302
        %v304 = vrot.slane %v282, %v303
        %vm305 = vcmask 261120
        %v307 = vsel %vm305, %v285, 0
        %v310 = vsel %vm305, %v286, 0
        %v313 = vsel %vm305, %v287, 0
        %v316 = vsel %vm305, %v288, 0
        %v319 = vsel %vm305, %v289, 0
        %v322 = vsel %vm305, %v290, 0
        %v325 = vsel %vm305, %v291, 0
        %v328 = vsel %vm305, %v292, 0
        %v331 = vsel %vm305, %v293, 0
        %v334 = vsel %vm305, %v294, 0
        %v337 = vsel %vm305, %v295, 0
        %v340 = vsel %vm305, %v296, 0
        %v343 = vsel %vm305, %v297, 0
        %v346 = vsel %vm305, %v298, 0
        %v349 = vsel %vm305, %v299, 0
        %v352 = vsel %vm305, %v300, 0
        %354 = vmatprep.subr.mxu0 0.0
        %355 = vmatpush1.msra.mxu0 %v278
        %356 = vmatprep.subr.mxu0 0.0
        %357 = vmatpush1.msra.mxu0 %v279
        %358 = vmatprep.subr.mxu0 0.0
        %359 = vmatpush1.msra.mxu0 %v280
        %360 = vmatprep.subr.mxu0 0.0
        %361 = vmatpush1.msra.mxu0 %v281
        %362 = vmatprep.subr.mxu0 0.0
        %363 = vmatpush1.msra.mxu0 0.0
        %364 = vmatprep.subr.mxu0 0.0
        %365 = vmatpush1.msra.mxu0 0.0
        %366 = vmatprep.subr.mxu0 0.0
        %367 = vmatpush1.msra.mxu0 0.0
        %368 = vmatprep.subr.mxu0 0.0
        %369 = vmatpush1.msra.mxu0 0.0
        %370 = vmatprep.subr.mxu0 0.0
        %371 = vmatpush1.msra.mxu0 0.0
        %372 = vmatprep.subr.mxu0 0.0
        %373 = vmatpush1.msra.mxu0 0.0
        %374 = vmatprep.subr.mxu0 0.0
        %375 = vmatpush1.msra.mxu0 0.0
        %376 = vmatprep.subr.mxu0 0.0
        %377 = vmatpush1.msra.mxu0 0.0
        %378 = vmatprep.subr.mxu0 0.0
        %379 = vmatpush1.msra.mxu0 0.0
        %380 = vmatprep.subr.mxu0 0.0
        %381 = vmatpush1.msra.mxu0 0.0
        %382 = vmatprep.subr.mxu0 0.0
        %383 = vmatpush1.msra.mxu0 0.0
        %384 = vmatprep.subr.mxu0 0.0
        %385 = vmatpush1.msra.mxu0 0.0
        %386 = vmatprep.subr.mxu0 0.0
        %387 = vmatpush1.msra.mxu0 0.0
        %388 = vmatprep.subr.mxu0 0.0
        %389 = vmatpush1.msra.mxu0 0.0
        %390 = vmatprep.subr.mxu0 0.0
        %391 = vmatpush1.msra.mxu0 0.0
        %392 = vmatprep.subr.mxu0 0.0
        %393 = vmatpush1.msra.mxu0 0.0
        %394 = vmatprep.subr.mxu0 0.0
        %395 = vmatpush1.msra.mxu0 0.0
        %396 = vmatprep.subr.mxu0 0.0
        %397 = vmatpush1.msra.mxu0 0.0
        %398 = vmatprep.subr.mxu0 0.0
        %399 = vmatpush1.msra.mxu0 0.0
        %400 = vmatprep.subr.mxu0 0.0
        %401 = vmatpush1.msra.mxu0 0.0
        %402 = vmatprep.subr.mxu0 0.0
        %403 = vmatpush1.msra.mxu0 0.0
        %404 = vmatprep.subr.mxu0 0.0
        %405 = vmatpush1.msra.mxu0 0.0
        %406 = vmatprep.subr.mxu0 0.0
        %407 = vmatpush1.msra.mxu0 0.0
        %408 = vmatprep.subr.mxu0 0.0
        %409 = vmatpush1.msra.mxu0 0.0
        %410 = vmatprep.subr.mxu0 0.0
        %411 = vmatpush1.msra.mxu0 0.0
        %412 = vmatprep.subr.mxu0 0.0
        %413 = vmatpush1.msra.mxu0 0.0
        %414 = vmatprep.subr.mxu0 0.0
        %415 = vmatpush1.msra.mxu0 0.0
        %416 = vmatprep.subr.mxu0 0.0
        %417 = vmatpush1.msra.mxu0 0.0
        %418 = vmatprep.mubr.f32.mxu0 0.0
        %419 = vmatmul.mubr.f32.gmra.mrb[0].mxu0 %v307
        %v420 = vpop.f32.mrb[0].mxu0
        %v421 = vadd.f32 %v304, %v420
        %v422 = vpop.f32.mrb[0].mxu0
        %423 = vmatprep.mubr.f32.mxu0 0.0
        %424 = vmatmul.mubr.f32.gmra.mrb[0].mxu0 %v310
        %v425 = vpop.f32.mrb[0].mxu0
        %v426 = vadd.f32 %v304, %v425
        %v427 = vpop.f32.mrb[0].mxu0
        %428 = vmatprep.mubr.f32.mxu0 0.0
        %429 = vmatmul.mubr.f32.gmra.mrb[0].mxu0 %v313
        %v430 = vpop.f32.mrb[0].mxu0
        %v431 = vadd.f32 %v304, %v430
        %v432 = vpop.f32.mrb[0].mxu0
        %433 = vmatprep.mubr.f32.mxu0 0.0
        %434 = vmatmul.mubr.f32.gmra.mrb[0].mxu0 %v316
        %v435 = vpop.f32.mrb[0].mxu0
        %v436 = vadd.f32 %v304, %v435
        %v437 = vpop.f32.mrb[0].mxu0
        %438 = vmatprep.mubr.f32.mxu0 0.0
        %439 = vmatmul.mubr.f32.gmra.mrb[0].mxu0 %v319
        %v440 = vpop.f32.mrb[0].mxu0
        %v441 = vadd.f32 %v304, %v440
        %v442 = vpop.f32.mrb[0].mxu0
        %443 = vmatprep.mubr.f32.mxu0 0.0
        %444 = vmatmul.mubr.f32.gmra.mrb[0].mxu0 %v322
        %v445 = vpop.f32.mrb[0].mxu0
        %v446 = vadd.f32 %v304, %v445
        %v447 = vpop.f32.mrb[0].mxu0
        %448 = vmatprep.mubr.f32.mxu0 0.0
        %449 = vmatmul.mubr.f32.gmra.mrb[0].mxu0 %v325
        %v450 = vpop.f32.mrb[0].mxu0
        %v451 = vadd.f32 %v304, %v450
        %v452 = vpop.f32.mrb[0].mxu0
        %453 = vmatprep.mubr.f32.mxu0 0.0
        %454 = vmatmul.mubr.f32.gmra.mrb[0].mxu0 %v328
        %v455 = vpop.f32.mrb[0].mxu0
        %v456 = vadd.f32 %v304, %v455
        %v457 = vpop.f32.mrb[0].mxu0
        %458 = vmatprep.mubr.f32.mxu0 0.0
        %459 = vmatmul.mubr.f32.gmra.mrb[0].mxu0 %v331
        %v460 = vpop.f32.mrb[0].mxu0
        %v461 = vadd.f32 %v304, %v460
        %v462 = vpop.f32.mrb[0].mxu0
        %463 = vmatprep.mubr.f32.mxu0 0.0
        %464 = vmatmul.mubr.f32.gmra.mrb[0].mxu0 %v334
        %v465 = vpop.f32.mrb[0].mxu0
        %v466 = vadd.f32 %v304, %v465
        %v467 = vpop.f32.mrb[0].mxu0
        %468 = vmatprep.mubr.f32.mxu0 0.0
        %469 = vmatmul.mubr.f32.gmra.mrb[0].mxu0 %v337
        %v470 = vpop.f32.mrb[0].mxu0
        %v471 = vadd.f32 %v304, %v470
        %v472 = vpop.f32.mrb[0].mxu0
        %473 = vmatprep.mubr.f32.mxu0 0.0
        %474 = vmatmul.mubr.f32.gmra.mrb[0].mxu0 %v340
        %v475 = vpop.f32.mrb[0].mxu0
        %v476 = vadd.f32 %v304, %v475
        %v477 = vpop.f32.mrb[0].mxu0
        %478 = vmatprep.mubr.f32.mxu0 0.0
        %479 = vmatmul.mubr.f32.gmra.mrb[0].mxu0 %v343
        %v480 = vpop.f32.mrb[0].mxu0
        %v481 = vadd.f32 %v304, %v480
        %v482 = vpop.f32.mrb[0].mxu0
        %483 = vmatprep.mubr.f32.mxu0 0.0
        %484 = vmatmul.mubr.f32.gmra.mrb[0].mxu0 %v346
        %v485 = vpop.f32.mrb[0].mxu0
        %v486 = vadd.f32 %v304, %v485
        %v487 = vpop.f32.mrb[0].mxu0
        %488 = vmatprep.mubr.f32.mxu0 0.0
        %489 = vmatmul.mubr.f32.gmra.mrb[0].mxu0 %v349
        %v490 = vpop.f32.mrb[0].mxu0
        %v491 = vadd.f32 %v304, %v490
        %v492 = vpop.f32.mrb[0].mxu0
        %493 = vmatprep.mubr.f32.mxu0 0.0
        %494 = vmatmul.mubr.f32.gmra.mrb[0].mxu0 %v352
        %v495 = vpop.f32.mrb[0].mxu0
        %v496 = vadd.f32 %v304, %v495
        %v497 = vpop.f32.mrb[0].mxu0
        %498 = vdwg.mxu0
        %v499 = vld [vmem:[%s269] sm:$0xff]
        %vm500 = vcmask 64512
        %v501 = vsel %vm500, %v421, -inf
        %v502 = vsel %vm500, %v426, -inf
        %v503 = vmax.f32 %v501, %v502
        %v504 = vrot.slane %v503, 4
        %v505 = vmax.f32 %v503, %v504
        %v506 = vrot.slane %v505, 2
        %v507 = vmax.f32 %v505, %v506
        %v508 = vrot.slane %v507, 1
        %v509 = vmax.f32 %v507, %v508
        %v510 = vsub.f32 %v421, %v509
        %v511 = vsub.f32 %v426, %v509
        %v512 = vmul.f32 %v510, 1.442695
        %v513 = vpow.pop %v512
        %v514 = vmul.f32 %v511, 1.442695
        %v515 = vpow.pop %v514
        %v516 = vsel %vm500, %v513, 0.0
        %v517 = vsel %vm500, %v515, 0.0
        %v518 = vadd.f32 %v516, %v517
        %v519 = vrot.slane %v518, 4
        %v520 = vadd.f32 %v518, %v519
        %v521 = vrot.slane %v520, 2
        %v522 = vadd.f32 %v520, %v521
        %v523 = vrot.slane %v522, 1
        %v524 = vadd.f32 %v522, %v523
        %vm525 = vcmask 130048
        %v527 = vsel %vm525, %v499, 0
        %529 = vmatprep.subr.mxu0 0.0
        %530 = vmatpush1.msra.mxu0 %v513
        %531 = vmatprep.subr.mxu0 0.0
        %532 = vmatpush1.msra.mxu0 %v515
        %533 = vmatprep.subr.mxu0 0.0
        %534 = vmatpush1.msra.mxu0 0.0
        %535 = vmatprep.subr.mxu0 0.0
        %536 = vmatpush1.msra.mxu0 0.0
        %537 = vmatprep.subr.mxu0 0.0
        %538 = vmatpush1.msra.mxu0 0.0
        %539 = vmatprep.subr.mxu0 0.0
        %540 = vmatpush1.msra.mxu0 0.0
        %541 = vmatprep.subr.mxu0 0.0
        %542 = vmatpush1.msra.mxu0 0.0
        %543 = vmatprep.subr.mxu0 0.0
        %544 = vmatpush1.msra.mxu0 0.0
        %545 = vmatprep.subr.mxu0 0.0
        %546 = vmatpush1.msra.mxu0 0.0
        %547 = vmatprep.subr.mxu0 0.0
        %548 = vmatpush1.msra.mxu0 0.0
        %549 = vmatprep.subr.mxu0 0.0
        %550 = vmatpush1.msra.mxu0 0.0
        %551 = vmatprep.subr.mxu0 0.0
        %552 = vmatpush1.msra.mxu0 0.0
        %553 = vmatprep.subr.mxu0 0.0
        %554 = vmatpush1.msra.mxu0 0.0
        %555 = vmatprep.subr.mxu0 0.0
        %556 = vmatpush1.msra.mxu0 0.0
        %557 = vmatprep.subr.mxu0 0.0
        %558 = vmatpush1.msra.mxu0 0.0
        %559 = vmatprep.subr.mxu0 0.0
        %560 = vmatpush1.msra.mxu0 0.0
        %561 = vmatprep.subr.mxu0 0.0
        %562 = vmatpush1.msra.mxu0 0.0
        %563 = vmatprep.subr.mxu0 0.0
        %564 = vmatpush1.msra.mxu0 0.0
        %565 = vmatprep.subr.mxu0 0.0
        %566 = vmatpush1.msra.mxu0 0.0
        %567 = vmatprep.subr.mxu0 0.0
        %568 = vmatpush1.msra.mxu0 0.0
        %569 = vmatprep.subr.mxu0 0.0
        %570 = vmatpush1.msra.mxu0 0.0
        %571 = vmatprep.subr.mxu0 0.0
        %572 = vmatpush1.msra.mxu0 0.0
        %573 = vmatprep.subr.mxu0 0.0
        %574 = vmatpush1.msra.mxu0 0.0
        %575 = vmatprep.subr.mxu0 0.0
        %576 = vmatpush1.msra.mxu0 0.0
        %577 = vmatprep.subr.mxu0 0.0
        %578 = vmatpush1.msra.mxu0 0.0
        %579 = vmatprep.subr.mxu0 0.0
        %580 = vmatpush1.msra.mxu0 0.0
        %581 = vmatprep.subr.mxu0 0.0
        %582 = vmatpush1.msra.mxu0 0.0
        %583 = vmatprep.subr.mxu0 0.0
        %584 = vmatpush1.msra.mxu0 0.0
        %585 = vmatprep.subr.mxu0 0.0
        %586 = vmatpush1.msra.mxu0 0.0
        %587 = vmatprep.subr.mxu0 0.0
        %588 = vmatpush1.msra.mxu0 0.0
        %589 = vmatprep.subr.mxu0 0.0
        %590 = vmatpush1.msra.mxu0 0.0
        %591 = vmatprep.subr.mxu0 0.0
        %592 = vmatpush1.msra.mxu0 0.0
        %593 = vmatprep.mubr.f32.mxu0 0.0
        %594 = vmatmul.mubr.f32.gmra.mrb[0].mxu0 %v527
        %v595 = vpop.f32.mrb[0].mxu0
        %v596 = vadd.f32 0.0, %v595
        %v597 = vpop.f32.mrb[0].mxu0
        %598 = vdwg.mxu0
        %v599 = vsel %vm500, %v431, -inf
        %v600 = vsel %vm500, %v436, -inf
        %v601 = vmax.f32 %v599, %v600
        %v602 = vrot.slane %v601, 4
        %v603 = vmax.f32 %v601, %v602
        %v604 = vrot.slane %v603, 2
        %v605 = vmax.f32 %v603, %v604
        %v606 = vrot.slane %v605, 1
        %v607 = vmax.f32 %v605, %v606
        %v608 = vsub.f32 %v431, %v607
        %v609 = vsub.f32 %v436, %v607
        %v610 = vmul.f32 %v608, 1.442695
        %v611 = vpow.pop %v610
        %v612 = vmul.f32 %v609, 1.442695
        %v613 = vpow.pop %v612
        %v614 = vsel %vm500, %v611, 0.0
        %v615 = vsel %vm500, %v613, 0.0
        %v616 = vadd.f32 %v614, %v615
        %v617 = vrot.slane %v616, 4
        %v618 = vadd.f32 %v616, %v617
        %v619 = vrot.slane %v618, 2
        %v620 = vadd.f32 %v618, %v619
        %v621 = vrot.slane %v620, 1
        %v622 = vadd.f32 %v620, %v621
        %v623 = vrot.slane %v499, 1
        %v624 = vsel %vm525, %v623, 0
        %626 = vmatprep.subr.mxu0 0.0
        %627 = vmatpush1.msra.mxu0 %v611
        %628 = vmatprep.subr.mxu0 0.0
        %629 = vmatpush1.msra.mxu0 %v613
        %630 = vmatprep.subr.mxu0 0.0
        %631 = vmatpush1.msra.mxu0 0.0
        %632 = vmatprep.subr.mxu0 0.0
        %633 = vmatpush1.msra.mxu0 0.0
        %634 = vmatprep.subr.mxu0 0.0
        %635 = vmatpush1.msra.mxu0 0.0
        %636 = vmatprep.subr.mxu0 0.0
        %637 = vmatpush1.msra.mxu0 0.0
        %638 = vmatprep.subr.mxu0 0.0
        %639 = vmatpush1.msra.mxu0 0.0
        %640 = vmatprep.subr.mxu0 0.0
        %641 = vmatpush1.msra.mxu0 0.0
        %642 = vmatprep.subr.mxu0 0.0
        %643 = vmatpush1.msra.mxu0 0.0
        %644 = vmatprep.subr.mxu0 0.0
        %645 = vmatpush1.msra.mxu0 0.0
        %646 = vmatprep.subr.mxu0 0.0
        %647 = vmatpush1.msra.mxu0 0.0
        %648 = vmatprep.subr.mxu0 0.0
        %649 = vmatpush1.msra.mxu0 0.0
        %650 = vmatprep.subr.mxu0 0.0
        %651 = vmatpush1.msra.mxu0 0.0
        %652 = vmatprep.subr.mxu0 0.0
        %653 = vmatpush1.msra.mxu0 0.0
        %654 = vmatprep.subr.mxu0 0.0
        %655 = vmatpush1.msra.mxu0 0.0
        %656 = vmatprep.subr.mxu0 0.0
        %657 = vmatpush1.msra.mxu0 0.0
        %658 = vmatprep.subr.mxu0 0.0
        %659 = vmatpush1.msra.mxu0 0.0
        %660 = vmatprep.subr.mxu0 0.0
        %661 = vmatpush1.msra.mxu0 0.0
        %662 = vmatprep.subr.mxu0 0.0
        %663 = vmatpush1.msra.mxu0 0.0
        %664 = vmatprep.subr.mxu0 0.0
        %665 = vmatpush1.msra.mxu0 0.0
        %666 = vmatprep.subr.mxu0 0.0
        %667 = vmatpush1.msra.mxu0 0.0
        %668 = vmatprep.subr.mxu0 0.0
        %669 = vmatpush1.msra.mxu0 0.0
        %670 = vmatprep.subr.mxu0 0.0
        %671 = vmatpush1.msra.mxu0 0.0
        %672 = vmatprep.subr.mxu0 0.0
        %673 = vmatpush1.msra.mxu0 0.0
        %674 = vmatprep.subr.mxu0 0.0
        %675 = vmatpush1.msra.mxu0 0.0
        %676 = vmatprep.subr.mxu0 0.0
        %677 = vmatpush1.msra.mxu0 0.0
        %678 = vmatprep.subr.mxu0 0.0
        %679 = vmatpush1.msra.mxu0 0.0
        %680 = vmatprep.subr.mxu0 0.0
        %681 = vmatpush1.msra.mxu0 0.0
        %682 = vmatprep.subr.mxu0 0.0
        %683 = vmatpush1.msra.mxu0 0.0
        %684 = vmatprep.subr.mxu0 0.0
        %685 = vmatpush1.msra.mxu0 0.0
        %686 = vmatprep.subr.mxu0 0.0
        %687 = vmatpush1.msra.mxu0 0.0
        %688 = vmatprep.subr.mxu0 0.0
        %689 = vmatpush1.msra.mxu0 0.0
        %690 = vmatprep.mubr.f32.mxu0 0.0
        %691 = vmatmul.mubr.f32.gmra.mrb[0].mxu0 %v624
        %v692 = vpop.f32.mrb[0].mxu0
        %v693 = vadd.f32 0.0, %v692
        %v694 = vpop.f32.mrb[0].mxu0
        %695 = vdwg.mxu0
        %v696 = vsel %vm500, %v441, -inf
        %v697 = vsel %vm500, %v446, -inf
        %v698 = vmax.f32 %v696, %v697
        %v699 = vrot.slane %v698, 4
        %v700 = vmax.f32 %v698, %v699
        %v701 = vrot.slane %v700, 2
        %v702 = vmax.f32 %v700, %v701
        %v703 = vrot.slane %v702, 1
        %v704 = vmax.f32 %v702, %v703
        %v705 = vsub.f32 %v441, %v704
        %v706 = vsub.f32 %v446, %v704
        %v707 = vmul.f32 %v705, 1.442695
        %v708 = vpow.pop %v707
        %v709 = vmul.f32 %v706, 1.442695
        %v710 = vpow.pop %v709
        %v711 = vsel %vm500, %v708, 0.0
        %v712 = vsel %vm500, %v710, 0.0
        %v713 = vadd.f32 %v711, %v712
        %v714 = vrot.slane %v713, 4
        %v715 = vadd.f32 %v713, %v714
        %v716 = vrot.slane %v715, 2
        %v717 = vadd.f32 %v715, %v716
        %v718 = vrot.slane %v717, 1
        %v719 = vadd.f32 %v717, %v718
        %v720 = vrot.slane %v499, 2
        %v721 = vsel %vm525, %v720, 0
        %723 = vmatprep.subr.mxu0 0.0
        %724 = vmatpush1.msra.mxu0 %v708
        %725 = vmatprep.subr.mxu0 0.0
        %726 = vmatpush1.msra.mxu0 %v710
        %727 = vmatprep.subr.mxu0 0.0
        %728 = vmatpush1.msra.mxu0 0.0
        %729 = vmatprep.subr.mxu0 0.0
        %730 = vmatpush1.msra.mxu0 0.0
        %731 = vmatprep.subr.mxu0 0.0
        %732 = vmatpush1.msra.mxu0 0.0
        %733 = vmatprep.subr.mxu0 0.0
        %734 = vmatpush1.msra.mxu0 0.0
        %735 = vmatprep.subr.mxu0 0.0
        %736 = vmatpush1.msra.mxu0 0.0
        %737 = vmatprep.subr.mxu0 0.0
        %738 = vmatpush1.msra.mxu0 0.0
        %739 = vmatprep.subr.mxu0 0.0
        %740 = vmatpush1.msra.mxu0 0.0
        %741 = vmatprep.subr.mxu0 0.0
        %742 = vmatpush1.msra.mxu0 0.0
        %743 = vmatprep.subr.mxu0 0.0
        %744 = vmatpush1.msra.mxu0 0.0
        %745 = vmatprep.subr.mxu0 0.0
        %746 = vmatpush1.msra.mxu0 0.0
        %747 = vmatprep.subr.mxu0 0.0
        %748 = vmatpush1.msra.mxu0 0.0
        %749 = vmatprep.subr.mxu0 0.0
        %750 = vmatpush1.msra.mxu0 0.0
        %751 = vmatprep.subr.mxu0 0.0
        %752 = vmatpush1.msra.mxu0 0.0
        %753 = vmatprep.subr.mxu0 0.0
        %754 = vmatpush1.msra.mxu0 0.0
        %755 = vmatprep.subr.mxu0 0.0
        %756 = vmatpush1.msra.mxu0 0.0
        %757 = vmatprep.subr.mxu0 0.0
        %758 = vmatpush1.msra.mxu0 0.0
        %759 = vmatprep.subr.mxu0 0.0
        %760 = vmatpush1.msra.mxu0 0.0
        %761 = vmatprep.subr.mxu0 0.0
        %762 = vmatpush1.msra.mxu0 0.0
        %763 = vmatprep.subr.mxu0 0.0
        %764 = vmatpush1.msra.mxu0 0.0
        %765 = vmatprep.subr.mxu0 0.0
        %766 = vmatpush1.msra.mxu0 0.0
        %767 = vmatprep.subr.mxu0 0.0
        %768 = vmatpush1.msra.mxu0 0.0
        %769 = vmatprep.subr.mxu0 0.0
        %770 = vmatpush1.msra.mxu0 0.0
        %771 = vmatprep.subr.mxu0 0.0
        %772 = vmatpush1.msra.mxu0 0.0
        %773 = vmatprep.subr.mxu0 0.0
        %774 = vmatpush1.msra.mxu0 0.0
        %775 = vmatprep.subr.mxu0 0.0
        %776 = vmatpush1.msra.mxu0 0.0
        %777 = vmatprep.subr.mxu0 0.0
        %778 = vmatpush1.msra.mxu0 0.0
        %779 = vmatprep.subr.mxu0 0.0
        %780 = vmatpush1.msra.mxu0 0.0
        %781 = vmatprep.subr.mxu0 0.0
        %782 = vmatpush1.msra.mxu0 0.0
        %783 = vmatprep.subr.mxu0 0.0
        %784 = vmatpush1.msra.mxu0 0.0
        %785 = vmatprep.subr.mxu0 0.0
        %786 = vmatpush1.msra.mxu0 0.0
        %787 = vmatprep.mubr.f32.mxu0 0.0
        %788 = vmatmul.mubr.f32.gmra.mrb[0].mxu0 %v721
        %v789 = vpop.f32.mrb[0].mxu0
        %v790 = vadd.f32 0.0, %v789
        %v791 = vpop.f32.mrb[0].mxu0
        %792 = vdwg.mxu0
        %v793 = vsel %vm500, %v451, -inf
        %v794 = vsel %vm500, %v456, -inf
        %v795 = vmax.f32 %v793, %v794
        %v796 = vrot.slane %v795, 4
        %v797 = vmax.f32 %v795, %v796
        %v798 = vrot.slane %v797, 2
        %v799 = vmax.f32 %v797, %v798
        %v800 = vrot.slane %v799, 1
        %v801 = vmax.f32 %v799, %v800
        %v802 = vsub.f32 %v451, %v801
        %v803 = vsub.f32 %v456, %v801
        %v804 = vmul.f32 %v802, 1.442695
        %v805 = vpow.pop %v804
        %v806 = vmul.f32 %v803, 1.442695
        %v807 = vpow.pop %v806
        %v808 = vsel %vm500, %v805, 0.0
        %v809 = vsel %vm500, %v807, 0.0
        %v810 = vadd.f32 %v808, %v809
        %v811 = vrot.slane %v810, 4
        %v812 = vadd.f32 %v810, %v811
        %v813 = vrot.slane %v812, 2
        %v814 = vadd.f32 %v812, %v813
        %v815 = vrot.slane %v814, 1
        %v816 = vadd.f32 %v814, %v815
        %v817 = vrot.slane %v499, 3
        %v818 = vsel %vm525, %v817, 0
        %820 = vmatprep.subr.mxu0 0.0
        %821 = vmatpush1.msra.mxu0 %v805
        %822 = vmatprep.subr.mxu0 0.0
        %823 = vmatpush1.msra.mxu0 %v807
        %824 = vmatprep.subr.mxu0 0.0
        %825 = vmatpush1.msra.mxu0 0.0
        %826 = vmatprep.subr.mxu0 0.0
        %827 = vmatpush1.msra.mxu0 0.0
        %828 = vmatprep.subr.mxu0 0.0
        %829 = vmatpush1.msra.mxu0 0.0
        %830 = vmatprep.subr.mxu0 0.0
        %831 = vmatpush1.msra.mxu0 0.0
        %832 = vmatprep.subr.mxu0 0.0
        %833 = vmatpush1.msra.mxu0 0.0
        %834 = vmatprep.subr.mxu0 0.0
        %835 = vmatpush1.msra.mxu0 0.0
        %836 = vmatprep.subr.mxu0 0.0
        %837 = vmatpush1.msra.mxu0 0.0
        %838 = vmatprep.subr.mxu0 0.0
        %839 = vmatpush1.msra.mxu0 0.0
        %840 = vmatprep.subr.mxu0 0.0
        %841 = vmatpush1.msra.mxu0 0.0
        %842 = vmatprep.subr.mxu0 0.0
        %843 = vmatpush1.msra.mxu0 0.0
        %844 = vmatprep.subr.mxu0 0.0
        %845 = vmatpush1.msra.mxu0 0.0
        %846 = vmatprep.subr.mxu0 0.0
        %847 = vmatpush1.msra.mxu0 0.0
        %848 = vmatprep.subr.mxu0 0.0
        %849 = vmatpush1.msra.mxu0 0.0
        %850 = vmatprep.subr.mxu0 0.0
        %851 = vmatpush1.msra.mxu0 0.0
        %852 = vmatprep.subr.mxu0 0.0
        %853 = vmatpush1.msra.mxu0 0.0
        %854 = vmatprep.subr.mxu0 0.0
        %855 = vmatpush1.msra.mxu0 0.0
        %856 = vmatprep.subr.mxu0 0.0
        %857 = vmatpush1.msra.mxu0 0.0
        %858 = vmatprep.subr.mxu0 0.0
        %859 = vmatpush1.msra.mxu0 0.0
        %860 = vmatprep.subr.mxu0 0.0
        %861 = vmatpush1.msra.mxu0 0.0
        %862 = vmatprep.subr.mxu0 0.0
        %863 = vmatpush1.msra.mxu0 0.0
        %864 = vmatprep.subr.mxu0 0.0
        %865 = vmatpush1.msra.mxu0 0.0
        %866 = vmatprep.subr.mxu0 0.0
        %867 = vmatpush1.msra.mxu0 0.0
        %868 = vmatprep.subr.mxu0 0.0
        %869 = vmatpush1.msra.mxu0 0.0
        %870 = vmatprep.subr.mxu0 0.0
        %871 = vmatpush1.msra.mxu0 0.0
        %872 = vmatprep.subr.mxu0 0.0
        %873 = vmatpush1.msra.mxu0 0.0
        %874 = vmatprep.subr.mxu0 0.0
        %875 = vmatpush1.msra.mxu0 0.0
        %876 = vmatprep.subr.mxu0 0.0
        %877 = vmatpush1.msra.mxu0 0.0
        %878 = vmatprep.subr.mxu0 0.0
        %879 = vmatpush1.msra.mxu0 0.0
        %880 = vmatprep.subr.mxu0 0.0
        %881 = vmatpush1.msra.mxu0 0.0
        %882 = vmatprep.subr.mxu0 0.0
        %883 = vmatpush1.msra.mxu0 0.0
        %884 = vmatprep.mubr.f32.mxu0 0.0
        %885 = vmatmul.mubr.f32.gmra.mrb[0].mxu0 %v818
        %v886 = vpop.f32.mrb[0].mxu0
        %v887 = vadd.f32 0.0, %v886
        %v888 = vpop.f32.mrb[0].mxu0
        %889 = vdwg.mxu0
        %v890 = vsel %vm500, %v461, -inf
        %v891 = vsel %vm500, %v466, -inf
        %v892 = vmax.f32 %v890, %v891
        %v893 = vrot.slane %v892, 4
        %v894 = vmax.f32 %v892, %v893
        %v895 = vrot.slane %v894, 2
        %v896 = vmax.f32 %v894, %v895
        %v897 = vrot.slane %v896, 1
        %v898 = vmax.f32 %v896, %v897
        %v899 = vsub.f32 %v461, %v898
        %v900 = vsub.f32 %v466, %v898
        %v901 = vmul.f32 %v899, 1.442695
        %v902 = vpow.pop %v901
        %v903 = vmul.f32 %v900, 1.442695
        %v904 = vpow.pop %v903
        %v905 = vsel %vm500, %v902, 0.0
        %v906 = vsel %vm500, %v904, 0.0
        %v907 = vadd.f32 %v905, %v906
        %v908 = vrot.slane %v907, 4
        %v909 = vadd.f32 %v907, %v908
        %v910 = vrot.slane %v909, 2
        %v911 = vadd.f32 %v909, %v910
        %v912 = vrot.slane %v911, 1
        %v913 = vadd.f32 %v911, %v912
        %v914 = vrot.slane %v499, 4
        %v915 = vsel %vm525, %v914, 0
        %917 = vmatprep.subr.mxu0 0.0
        %918 = vmatpush1.msra.mxu0 %v902
        %919 = vmatprep.subr.mxu0 0.0
        %920 = vmatpush1.msra.mxu0 %v904
        %921 = vmatprep.subr.mxu0 0.0
        %922 = vmatpush1.msra.mxu0 0.0
        %923 = vmatprep.subr.mxu0 0.0
        %924 = vmatpush1.msra.mxu0 0.0
        %925 = vmatprep.subr.mxu0 0.0
        %926 = vmatpush1.msra.mxu0 0.0
        %927 = vmatprep.subr.mxu0 0.0
        %928 = vmatpush1.msra.mxu0 0.0
        %929 = vmatprep.subr.mxu0 0.0
        %930 = vmatpush1.msra.mxu0 0.0
        %931 = vmatprep.subr.mxu0 0.0
        %932 = vmatpush1.msra.mxu0 0.0
        %933 = vmatprep.subr.mxu0 0.0
        %934 = vmatpush1.msra.mxu0 0.0
        %935 = vmatprep.subr.mxu0 0.0
        %936 = vmatpush1.msra.mxu0 0.0
        %937 = vmatprep.subr.mxu0 0.0
        %938 = vmatpush1.msra.mxu0 0.0
        %939 = vmatprep.subr.mxu0 0.0
        %940 = vmatpush1.msra.mxu0 0.0
        %941 = vmatprep.subr.mxu0 0.0
        %942 = vmatpush1.msra.mxu0 0.0
        %943 = vmatprep.subr.mxu0 0.0
        %944 = vmatpush1.msra.mxu0 0.0
        %945 = vmatprep.subr.mxu0 0.0
        %946 = vmatpush1.msra.mxu0 0.0
        %947 = vmatprep.subr.mxu0 0.0
        %948 = vmatpush1.msra.mxu0 0.0
        %949 = vmatprep.subr.mxu0 0.0
        %950 = vmatpush1.msra.mxu0 0.0
        %951 = vmatprep.subr.mxu0 0.0
        %952 = vmatpush1.msra.mxu0 0.0
        %953 = vmatprep.subr.mxu0 0.0
        %954 = vmatpush1.msra.mxu0 0.0
        %955 = vmatprep.subr.mxu0 0.0
        %956 = vmatpush1.msra.mxu0 0.0
        %957 = vmatprep.subr.mxu0 0.0
        %958 = vmatpush1.msra.mxu0 0.0
        %959 = vmatprep.subr.mxu0 0.0
        %960 = vmatpush1.msra.mxu0 0.0
        %961 = vmatprep.subr.mxu0 0.0
        %962 = vmatpush1.msra.mxu0 0.0
        %963 = vmatprep.subr.mxu0 0.0
        %964 = vmatpush1.msra.mxu0 0.0
        %965 = vmatprep.subr.mxu0 0.0
        %966 = vmatpush1.msra.mxu0 0.0
        %967 = vmatprep.subr.mxu0 0.0
        %968 = vmatpush1.msra.mxu0 0.0
        %969 = vmatprep.subr.mxu0 0.0
        %970 = vmatpush1.msra.mxu0 0.0
        %971 = vmatprep.subr.mxu0 0.0
        %972 = vmatpush1.msra.mxu0 0.0
        %973 = vmatprep.subr.mxu0 0.0
        %974 = vmatpush1.msra.mxu0 0.0
        %975 = vmatprep.subr.mxu0 0.0
        %976 = vmatpush1.msra.mxu0 0.0
        %977 = vmatprep.subr.mxu0 0.0
        %978 = vmatpush1.msra.mxu0 0.0
        %979 = vmatprep.subr.mxu0 0.0
        %980 = vmatpush1.msra.mxu0 0.0
        %981 = vmatprep.mubr.f32.mxu0 0.0
        %982 = vmatmul.mubr.f32.gmra.mrb[0].mxu0 %v915
        %v983 = vpop.f32.mrb[0].mxu0
        %v984 = vadd.f32 0.0, %v983
        %v985 = vpop.f32.mrb[0].mxu0
        %986 = vdwg.mxu0
        %v987 = vsel %vm500, %v471, -inf
        %v988 = vsel %vm500, %v476, -inf
        %v989 = vmax.f32 %v987, %v988
        %v990 = vrot.slane %v989, 4
        %v991 = vmax.f32 %v989, %v990
        %v992 = vrot.slane %v991, 2
        %v993 = vmax.f32 %v991, %v992
        %v994 = vrot.slane %v993, 1
        %v995 = vmax.f32 %v993, %v994
        %v996 = vsub.f32 %v471, %v995
        %v997 = vsub.f32 %v476, %v995
        %v998 = vmul.f32 %v996, 1.442695
        %v999 = vpow.pop %v998
        %v1000 = vmul.f32 %v997, 1.442695
        %v1001 = vpow.pop %v1000
        %v1002 = vsel %vm500, %v999, 0.0
        %v1003 = vsel %vm500, %v1001, 0.0
        %v1004 = vadd.f32 %v1002, %v1003
        %v1005 = vrot.slane %v1004, 4
        %v1006 = vadd.f32 %v1004, %v1005
        %v1007 = vrot.slane %v1006, 2
        %v1008 = vadd.f32 %v1006, %v1007
        %v1009 = vrot.slane %v1008, 1
        %v1010 = vadd.f32 %v1008, %v1009
        %v1011 = vrot.slane %v499, 5
        %v1012 = vsel %vm525, %v1011, 0
        %1014 = vmatprep.subr.mxu0 0.0
        %1015 = vmatpush1.msra.mxu0 %v999
        %1016 = vmatprep.subr.mxu0 0.0
        %1017 = vmatpush1.msra.mxu0 %v1001
        %1018 = vmatprep.subr.mxu0 0.0
        %1019 = vmatpush1.msra.mxu0 0.0
        %1020 = vmatprep.subr.mxu0 0.0
        %1021 = vmatpush1.msra.mxu0 0.0
        %1022 = vmatprep.subr.mxu0 0.0
        %1023 = vmatpush1.msra.mxu0 0.0
        %1024 = vmatprep.subr.mxu0 0.0
        %1025 = vmatpush1.msra.mxu0 0.0
        %1026 = vmatprep.subr.mxu0 0.0
        %1027 = vmatpush1.msra.mxu0 0.0
        %1028 = vmatprep.subr.mxu0 0.0
        %1029 = vmatpush1.msra.mxu0 0.0
        %1030 = vmatprep.subr.mxu0 0.0
        %1031 = vmatpush1.msra.mxu0 0.0
        %1032 = vmatprep.subr.mxu0 0.0
        %1033 = vmatpush1.msra.mxu0 0.0
        %1034 = vmatprep.subr.mxu0 0.0
        %1035 = vmatpush1.msra.mxu0 0.0
        %1036 = vmatprep.subr.mxu0 0.0
        %1037 = vmatpush1.msra.mxu0 0.0
        %1038 = vmatprep.subr.mxu0 0.0
        %1039 = vmatpush1.msra.mxu0 0.0
        %1040 = vmatprep.subr.mxu0 0.0
        %1041 = vmatpush1.msra.mxu0 0.0
        %1042 = vmatprep.subr.mxu0 0.0
        %1043 = vmatpush1.msra.mxu0 0.0
        %1044 = vmatprep.subr.mxu0 0.0
        %1045 = vmatpush1.msra.mxu0 0.0
        %1046 = vmatprep.subr.mxu0 0.0
        %1047 = vmatpush1.msra.mxu0 0.0
        %1048 = vmatprep.subr.mxu0 0.0
        %1049 = vmatpush1.msra.mxu0 0.0
        %1050 = vmatprep.subr.mxu0 0.0
        %1051 = vmatpush1.msra.mxu0 0.0
        %1052 = vmatprep.subr.mxu0 0.0
        %1053 = vmatpush1.msra.mxu0 0.0
        %1054 = vmatprep.subr.mxu0 0.0
        %1055 = vmatpush1.msra.mxu0 0.0
        %1056 = vmatprep.subr.mxu0 0.0
        %1057 = vmatpush1.msra.mxu0 0.0
        %1058 = vmatprep.subr.mxu0 0.0
        %1059 = vmatpush1.msra.mxu0 0.0
        %1060 = vmatprep.subr.mxu0 0.0
        %1061 = vmatpush1.msra.mxu0 0.0
        %1062 = vmatprep.subr.mxu0 0.0
        %1063 = vmatpush1.msra.mxu0 0.0
        %1064 = vmatprep.subr.mxu0 0.0
        %1065 = vmatpush1.msra.mxu0 0.0
        %1066 = vmatprep.subr.mxu0 0.0
        %1067 = vmatpush1.msra.mxu0 0.0
        %1068 = vmatprep.subr.mxu0 0.0
        %1069 = vmatpush1.msra.mxu0 0.0
        %1070 = vmatprep.subr.mxu0 0.0
        %1071 = vmatpush1.msra.mxu0 0.0
        %1072 = vmatprep.subr.mxu0 0.0
        %1073 = vmatpush1.msra.mxu0 0.0
        %1074 = vmatprep.subr.mxu0 0.0
        %1075 = vmatpush1.msra.mxu0 0.0
        %1076 = vmatprep.subr.mxu0 0.0
        %1077 = vmatpush1.msra.mxu0 0.0
        %1078 = vmatprep.mubr.f32.mxu0 0.0
        %1079 = vmatmul.mubr.f32.gmra.mrb[0].mxu0 %v1012
        %v1080 = vpop.f32.mrb[0].mxu0
        %v1081 = vadd.f32 0.0, %v1080
        %v1082 = vpop.f32.mrb[0].mxu0
        %1083 = vdwg.mxu0
        %v1084 = vsel %vm500, %v481, -inf
        %v1085 = vsel %vm500, %v486, -inf
        %v1086 = vmax.f32 %v1084, %v1085
        %v1087 = vrot.slane %v1086, 4
        %v1088 = vmax.f32 %v1086, %v1087
        %v1089 = vrot.slane %v1088, 2
        %v1090 = vmax.f32 %v1088, %v1089
        %v1091 = vrot.slane %v1090, 1
        %v1092 = vmax.f32 %v1090, %v1091
        %v1093 = vsub.f32 %v481, %v1092
        %v1094 = vsub.f32 %v486, %v1092
        %v1095 = vmul.f32 %v1093, 1.442695
        %v1096 = vpow.pop %v1095
        %v1097 = vmul.f32 %v1094, 1.442695
        %v1098 = vpow.pop %v1097
        %v1099 = vsel %vm500, %v1096, 0.0
        %v1100 = vsel %vm500, %v1098, 0.0
        %v1101 = vadd.f32 %v1099, %v1100
        %v1102 = vrot.slane %v1101, 4
        %v1103 = vadd.f32 %v1101, %v1102
        %v1104 = vrot.slane %v1103, 2
        %v1105 = vadd.f32 %v1103, %v1104
        %v1106 = vrot.slane %v1105, 1
        %v1107 = vadd.f32 %v1105, %v1106
        %v1108 = vrot.slane %v499, 6
        %v1109 = vsel %vm525, %v1108, 0
        %1111 = vmatprep.subr.mxu0 0.0
        %1112 = vmatpush1.msra.mxu0 %v1096
        %1113 = vmatprep.subr.mxu0 0.0
        %1114 = vmatpush1.msra.mxu0 %v1098
        %1115 = vmatprep.subr.mxu0 0.0
        %1116 = vmatpush1.msra.mxu0 0.0
        %1117 = vmatprep.subr.mxu0 0.0
        %1118 = vmatpush1.msra.mxu0 0.0
        %1119 = vmatprep.subr.mxu0 0.0
        %1120 = vmatpush1.msra.mxu0 0.0
        %1121 = vmatprep.subr.mxu0 0.0
        %1122 = vmatpush1.msra.mxu0 0.0
        %1123 = vmatprep.subr.mxu0 0.0
        %1124 = vmatpush1.msra.mxu0 0.0
        %1125 = vmatprep.subr.mxu0 0.0
        %1126 = vmatpush1.msra.mxu0 0.0
        %1127 = vmatprep.subr.mxu0 0.0
        %1128 = vmatpush1.msra.mxu0 0.0
        %1129 = vmatprep.subr.mxu0 0.0
        %1130 = vmatpush1.msra.mxu0 0.0
        %1131 = vmatprep.subr.mxu0 0.0
        %1132 = vmatpush1.msra.mxu0 0.0
        %1133 = vmatprep.subr.mxu0 0.0
        %1134 = vmatpush1.msra.mxu0 0.0
        %1135 = vmatprep.subr.mxu0 0.0
        %1136 = vmatpush1.msra.mxu0 0.0
        %1137 = vmatprep.subr.mxu0 0.0
        %1138 = vmatpush1.msra.mxu0 0.0
        %1139 = vmatprep.subr.mxu0 0.0
        %1140 = vmatpush1.msra.mxu0 0.0
        %1141 = vmatprep.subr.mxu0 0.0
        %1142 = vmatpush1.msra.mxu0 0.0
        %1143 = vmatprep.subr.mxu0 0.0
        %1144 = vmatpush1.msra.mxu0 0.0
        %1145 = vmatprep.subr.mxu0 0.0
        %1146 = vmatpush1.msra.mxu0 0.0
        %1147 = vmatprep.subr.mxu0 0.0
        %1148 = vmatpush1.msra.mxu0 0.0
        %1149 = vmatprep.subr.mxu0 0.0
        %1150 = vmatpush1.msra.mxu0 0.0
        %1151 = vmatprep.subr.mxu0 0.0
        %1152 = vmatpush1.msra.mxu0 0.0
        %1153 = vmatprep.subr.mxu0 0.0
        %1154 = vmatpush1.msra.mxu0 0.0
        %1155 = vmatprep.subr.mxu0 0.0
        %1156 = vmatpush1.msra.mxu0 0.0
        %1157 = vmatprep.subr.mxu0 0.0
        %1158 = vmatpush1.msra.mxu0 0.0
        %1159 = vmatprep.subr.mxu0 0.0
        %1160 = vmatpush1.msra.mxu0 0.0
        %1161 = vmatprep.subr.mxu0 0.0
        %1162 = vmatpush1.msra.mxu0 0.0
        %1163 = vmatprep.subr.mxu0 0.0
        %1164 = vmatpush1.msra.mxu0 0.0
        %1165 = vmatprep.subr.mxu0 0.0
        %1166 = vmatpush1.msra.mxu0 0.0
        %1167 = vmatprep.subr.mxu0 0.0
        %1168 = vmatpush1.msra.mxu0 0.0
        %1169 = vmatprep.subr.mxu0 0.0
        %1170 = vmatpush1.msra.mxu0 0.0
        %1171 = vmatprep.subr.mxu0 0.0
        %1172 = vmatpush1.msra.mxu0 0.0
        %1173 = vmatprep.subr.mxu0 0.0
        %1174 = vmatpush1.msra.mxu0 0.0
        %1175 = vmatprep.mubr.f32.mxu0 0.0
        %1176 = vmatmul.mubr.f32.gmra.mrb[0].mxu0 %v1109
        %v1177 = vpop.f32.mrb[0].mxu0
        %v1178 = vadd.f32 0.0, %v1177
        %v1179 = vpop.f32.mrb[0].mxu0
        %1180 = vdwg.mxu0
        %v1181 = vsel %vm500, %v491, -inf
        %v1182 = vsel %vm500, %v496, -inf
        %v1183 = vmax.f32 %v1181, %v1182
        %v1184 = vrot.slane %v1183, 4
        %v1185 = vmax.f32 %v1183, %v1184
        %v1186 = vrot.slane %v1185, 2
        %v1187 = vmax.f32 %v1185, %v1186
        %v1188 = vrot.slane %v1187, 1
        %v1189 = vmax.f32 %v1187, %v1188
        %v1190 = vsub.f32 %v491, %v1189
        %v1191 = vsub.f32 %v496, %v1189
        %v1192 = vmul.f32 %v1190, 1.442695
        %v1193 = vpow.pop %v1192
        %v1194 = vmul.f32 %v1191, 1.442695
        %v1195 = vpow.pop %v1194
        %v1196 = vsel %vm500, %v1193, 0.0
        %v1197 = vsel %vm500, %v1195, 0.0
        %v1198 = vadd.f32 %v1196, %v1197
        %v1199 = vrot.slane %v1198, 4
        %v1200 = vadd.f32 %v1198, %v1199
        %v1201 = vrot.slane %v1200, 2
        %v1202 = vadd.f32 %v1200, %v1201
        %v1203 = vrot.slane %v1202, 1
        %v1204 = vadd.f32 %v1202, %v1203
        %v1205 = vrot.slane %v499, 7
        %v1206 = vsel %vm525, %v1205, 0
        %1208 = vmatprep.subr.mxu0 0.0
        %1209 = vmatpush1.msra.mxu0 %v1193
        %1210 = vmatprep.subr.mxu0 0.0
        %1211 = vmatpush1.msra.mxu0 %v1195
        %1212 = vmatprep.subr.mxu0 0.0
        %1213 = vmatpush1.msra.mxu0 0.0
        %1214 = vmatprep.subr.mxu0 0.0
        %1215 = vmatpush1.msra.mxu0 0.0
        %1216 = vmatprep.subr.mxu0 0.0
        %1217 = vmatpush1.msra.mxu0 0.0
        %1218 = vmatprep.subr.mxu0 0.0
        %1219 = vmatpush1.msra.mxu0 0.0
        %1220 = vmatprep.subr.mxu0 0.0
        %1221 = vmatpush1.msra.mxu0 0.0
        %1222 = vmatprep.subr.mxu0 0.0
        %1223 = vmatpush1.msra.mxu0 0.0
        %1224 = vmatprep.subr.mxu0 0.0
        %1225 = vmatpush1.msra.mxu0 0.0
        %1226 = vmatprep.subr.mxu0 0.0
        %1227 = vmatpush1.msra.mxu0 0.0
        %1228 = vmatprep.subr.mxu0 0.0
        %1229 = vmatpush1.msra.mxu0 0.0
        %1230 = vmatprep.subr.mxu0 0.0
        %1231 = vmatpush1.msra.mxu0 0.0
        %1232 = vmatprep.subr.mxu0 0.0
        %1233 = vmatpush1.msra.mxu0 0.0
        %1234 = vmatprep.subr.mxu0 0.0
        %1235 = vmatpush1.msra.mxu0 0.0
        %1236 = vmatprep.subr.mxu0 0.0
        %1237 = vmatpush1.msra.mxu0 0.0
        %1238 = vmatprep.subr.mxu0 0.0
        %1239 = vmatpush1.msra.mxu0 0.0
        %1240 = vmatprep.subr.mxu0 0.0
        %1241 = vmatpush1.msra.mxu0 0.0
        %1242 = vmatprep.subr.mxu0 0.0
        %1243 = vmatpush1.msra.mxu0 0.0
        %1244 = vmatprep.subr.mxu0 0.0
        %1245 = vmatpush1.msra.mxu0 0.0
        %1246 = vmatprep.subr.mxu0 0.0
        %1247 = vmatpush1.msra.mxu0 0.0
        %1248 = vmatprep.subr.mxu0 0.0
        %1249 = vmatpush1.msra.mxu0 0.0
        %1250 = vmatprep.subr.mxu0 0.0
        %1251 = vmatpush1.msra.mxu0 0.0
        %1252 = vmatprep.subr.mxu0 0.0
        %1253 = vmatpush1.msra.mxu0 0.0
        %1254 = vmatprep.subr.mxu0 0.0
        %1255 = vmatpush1.msra.mxu0 0.0
        %1256 = vmatprep.subr.mxu0 0.0
        %1257 = vmatpush1.msra.mxu0 0.0
        %1258 = vmatprep.subr.mxu0 0.0
        %1259 = vmatpush1.msra.mxu0 0.0
        %1260 = vmatprep.subr.mxu0 0.0
        %1261 = vmatpush1.msra.mxu0 0.0
        %1262 = vmatprep.subr.mxu0 0.0
        %1263 = vmatpush1.msra.mxu0 0.0
        %1264 = vmatprep.subr.mxu0 0.0
        %1265 = vmatpush1.msra.mxu0 0.0
        %1266 = vmatprep.subr.mxu0 0.0
        %1267 = vmatpush1.msra.mxu0 0.0
        %1268 = vmatprep.subr.mxu0 0.0
        %1269 = vmatpush1.msra.mxu0 0.0
        %1270 = vmatprep.subr.mxu0 0.0
        %1271 = vmatpush1.msra.mxu0 0.0
        %1272 = vmatprep.mubr.f32.mxu0 0.0
        %1273 = vmatmul.mubr.f32.gmra.mrb[0].mxu0 %v1206
        %v1274 = vpop.f32.mrb[0].mxu0
        %v1275 = vadd.f32 0.0, %v1274
        %v1276 = vpop.f32.mrb[0].mxu0
        %1277 = vdwg.mxu0
        %v1279 = vrot.slane %v693, 7
        %v1282 = vrot.slane %v790, 6
        %v1285 = vrot.slane %v887, 5
        %v1288 = vrot.slane %v984, 4
        %v1291 = vrot.slane %v1081, 3
        %v1294 = vrot.slane %v1178, 2
        %v1297 = vrot.slane %v1275, 1
        %vm1299 = vcmask 1040384
        %v1300 = vsel %vm1299, %v596, %v1279
        %vm1301 = vcmask 1041408
        %v1302 = vsel %vm1301, %v1300, %v1282
        %vm1303 = vcmask 1042432
        %v1304 = vsel %vm1303, %v1302, %v1285
        %vm1305 = vcmask 1043456
        %v1306 = vsel %vm1305, %v1304, %v1288
        %vm1307 = vcmask 1044480
        %v1308 = vsel %vm1307, %v1306, %v1291
        %vm1309 = vcmask 1045504
        %v1310 = vsel %vm1309, %v1308, %v1294
        %vm1311 = vcmask 1046528
        %v1312 = vsel %vm1311, %v1310, %v1297
        %v1313 = vsel %vm1299, %v524, %v622
        %v1314 = vsel %vm1301, %v1313, %v719
        %v1315 = vsel %vm1303, %v1314, %v816
        %v1316 = vsel %vm1305, %v1315, %v913
        %v1317 = vsel %vm1307, %v1316, %v1010
        %v1318 = vsel %vm1309, %v1317, %v1107
        %v1319 = vsel %vm1311, %v1318, %v1204
        %v1320 = vrcp.pop %v1319
        %v1321 = vmul.f32 %v1312, %v1320
        %v1322 = vlaneseq
        %v1323 = vshrl.u32 %v1322, 7
        %v1324 = vsub.s32 0, %v1323
        %v1325 = vrot.slane %v284, %v1324
        %v1327 = vsel %vm500, %v1321, 0
        %1329 = vmatprep.subr.mxu0 0.0
        %1330 = vmatpush1.msra.mxu0 %v283
        %1331 = vmatprep.subr.mxu0 0.0
        %1332 = vmatpush1.msra.mxu0 0.0
        %1333 = vmatprep.subr.mxu0 0.0
        %1334 = vmatpush1.msra.mxu0 0.0
        %1335 = vmatprep.subr.mxu0 0.0
        %1336 = vmatpush1.msra.mxu0 0.0
        %1337 = vmatprep.subr.mxu0 0.0
        %1338 = vmatpush1.msra.mxu0 0.0
        %1339 = vmatprep.subr.mxu0 0.0
        %1340 = vmatpush1.msra.mxu0 0.0
        %1341 = vmatprep.subr.mxu0 0.0
        %1342 = vmatpush1.msra.mxu0 0.0
        %1343 = vmatprep.subr.mxu0 0.0
        %1344 = vmatpush1.msra.mxu0 0.0
        %1345 = vmatprep.subr.mxu0 0.0
        %1346 = vmatpush1.msra.mxu0 0.0
        %1347 = vmatprep.subr.mxu0 0.0
        %1348 = vmatpush1.msra.mxu0 0.0
        %1349 = vmatprep.subr.mxu0 0.0
        %1350 = vmatpush1.msra.mxu0 0.0
        %1351 = vmatprep.subr.mxu0 0.0
        %1352 = vmatpush1.msra.mxu0 0.0
        %1353 = vmatprep.subr.mxu0 0.0
        %1354 = vmatpush1.msra.mxu0 0.0
        %1355 = vmatprep.subr.mxu0 0.0
        %1356 = vmatpush1.msra.mxu0 0.0
        %1357 = vmatprep.subr.mxu0 0.0
        %1358 = vmatpush1.msra.mxu0 0.0
        %1359 = vmatprep.subr.mxu0 0.0
        %1360 = vmatpush1.msra.mxu0 0.0
        %1361 = vmatprep.subr.mxu0 0.0
        %1362 = vmatpush1.msra.mxu0 0.0
        %1363 = vmatprep.subr.mxu0 0.0
        %1364 = vmatpush1.msra.mxu0 0.0
        %1365 = vmatprep.subr.mxu0 0.0
        %1366 = vmatpush1.msra.mxu0 0.0
        %1367 = vmatprep.subr.mxu0 0.0
        %1368 = vmatpush1.msra.mxu0 0.0
        %1369 = vmatprep.subr.mxu0 0.0
        %1370 = vmatpush1.msra.mxu0 0.0
        %1371 = vmatprep.subr.mxu0 0.0
        %1372 = vmatpush1.msra.mxu0 0.0
        %1373 = vmatprep.subr.mxu0 0.0
        %1374 = vmatpush1.msra.mxu0 0.0
        %1375 = vmatprep.subr.mxu0 0.0
        %1376 = vmatpush1.msra.mxu0 0.0
        %1377 = vmatprep.subr.mxu0 0.0
        %1378 = vmatpush1.msra.mxu0 0.0
        %1379 = vmatprep.subr.mxu0 0.0
        %1380 = vmatpush1.msra.mxu0 0.0
        %1381 = vmatprep.subr.mxu0 0.0
        %1382 = vmatpush1.msra.mxu0 0.0
        %1383 = vmatprep.subr.mxu0 0.0
        %1384 = vmatpush1.msra.mxu0 0.0
        %1385 = vmatprep.subr.mxu0 0.0
        %1386 = vmatpush1.msra.mxu0 0.0
        %1387 = vmatprep.subr.mxu0 0.0
        %1388 = vmatpush1.msra.mxu0 0.0
        %1389 = vmatprep.subr.mxu0 0.0
        %1390 = vmatpush1.msra.mxu0 0.0
        %1391 = vmatprep.subr.mxu0 0.0
        %1392 = vmatpush1.msra.mxu0 0.0
        %1393 = vmatprep.mubr.f32.mxu0 0.0
        %1394 = vmatmul.mubr.f32.gmra.mrb[0].mxu0 %v1327
        %v1395 = vpop.f32.mrb[0].mxu0
        %v1396 = vadd.f32 %v1325, %v1395
        %v1397 = vpop.f32.mrb[0].mxu0
        %1398 = vdwg.mxu0
        %v1399 = vmax.f32 %v1396, 0.0
        %vm1400 = vcmp.ne.f32.partialorder %v1396, %v1396
        %v1401 = vadd.f32 %v1396, 0.0
        %v1402 = vand.u32 2147483647, %v1396
        %v1403 = vsub.f32 0.0, %v1402
        %v1404 = vmul.f32 %v1403, 1.442695
        %v1405 = vpow.pop %v1404
        %v1406 = vadd.f32 %v1405, 1.0
        %v1407 = vlog2.pop %v1406
        %v1408 = vmul.f32 %v1407, 0.6931472
        %v1409 = vmul.f32 -0.5, %v1405
        %v1410 = vadd.f32 %v1409, 1.0
        %v1411 = vmul.f32 %v1410, %v1405
        %v1412 = vand.u32 2147483647, %v1405
        %vm1413 = vcmp.lt.f32.partialorder %v1412, 0.0004427343
        %v1414 = vsel %vm1413, %v1411, %v1408
        %v1415 = vadd.f32 %v1399, %v1414
        %v1416 = vsel %vm1400, %v1401, %v1415
        %v1417 = vld [vmem:[%s273] sm:$0xff]
        %1419 = vrot.lane.b32.xlu0 %v1417, 4
        %v1420 = vpop.permute.xlu0 %1419
        %v1422 = vmul.f32 %v1416, %v1420
        %1424 = vrot.lane.b32.xlu0 %v1422, 124
        %v1425 = vpop.permute.xlu0 %1424
        %v1427 = vadd.f32 %v1396, %v1425
        %vm1428 = vcmask 31744
        %1429 = vst.msk [vmem:[%s277] sm:$0xff] %vm1428, %v1427
        %p1430 = scmp.lt.s32.totalorder %s19, 1
        %s1431 = scalar_select %p1430, %s19, 1
        %s1432 = smul.addr %s1431, 8
        %s1433 = scalar_lea.vmem %s5, %s1432
        // Predicated region
        $region45: #{factor_encoder_batched.1} parent=39 // pred_check
          %p1434 = pneg %p157
        $region46: #{factor_encoder_batched.1} parent=39 // pred_check_branch
          %1436 = sbr.rel (%p1434) target = $region48
        $region47: #{factor_encoder_batched.1} parent=39 // pred_region
          _
        $region48: #{factor_encoder_batched.1} parent=39 // pred_fallthru
          _
      $region40: #{factor_encoder_batched.1} parent=5 // pred_fallthru
        _
      %p1437 = scmp.le.s32.totalorder 2, %s14
      // Predicated region
      $region49: #{factor_encoder_batched.1} parent=5 // pred_check
        %p1438 = pneg %p1437
      $region50: #{factor_encoder_batched.1} parent=5 // pred_check_branch
        %1440 = sbr.rel (%p1438) target = $region52
      $region51: #{factor_encoder_batched.1} parent=5 // pred_region
        %s1441 = ssub.s32 %s14, 2
        // Predicated region
        $region53: #{factor_encoder_batched.1} parent=51 // pred_check
          %p1442 = pneg %p163
        $region54: #{factor_encoder_batched.1} parent=51 // pred_check_branch
          %1444 = sbr.rel (%p1442) target = $region56
        $region55: #{factor_encoder_batched.1} parent=51 // pred_region
          %p1445 = scmp.lt.s32.totalorder %s20, 1
          %s1446 = scalar_select %p1445, %s20, 1
          %s1447 = smul.addr %s1446, 8
          %s1448 = scalar_lea.vmem %s5, %s1447
        $region56: #{factor_encoder_batched.1} parent=51 // pred_fallthru
          _
      $region52: #{factor_encoder_batched.1} parent=5 // pred_fallthru
        _
    $region6: #{factor_encoder_batched.1} parent=1 // loop_footer
      %s18 = sadd.s32 1, %s14
    $region7: #{factor_encoder_batched.1} parent=1 // loop_footer_branch
      %13 = sbr.rel target = $region3
    $region8: #{factor_encoder_batched.1} parent=1 // loop_exit
      _
    %1449 = vsyncpa [#allocation3], 1
    %s1450 = scalar_lea.sflag [#allocation3], 1
    %1451 = vsyncpa %s1450, 1

</llo_original>
